<compile_context>
chip_gen: v7x
topology: tpu7x:2x2x1
jax: 0.10.0
libtpu: 0.0.40
codegen_flags: <defaults>
</compile_context>

<pallas_src>
import numpy as np
import jax
import jax.numpy as jnp
from jax.experimental import pallas as pl
from jax.experimental.pallas import tpu as pltpu

N_VERT = 778
VPAD = 896            # 7 * 128 : lane-dense vertex axis
N_JREG = 21           # 16 MANO joints + 5 fingertip vertices
JPAD = 128            # lane-dense joint axis
N_JOINT = 16
N_BETA = 10
N_POSEDIM = 135       # 15 joints * 9
N_BASIS = N_BETA + N_POSEDIM   # 145 = fused [shapedirs ; posedirs] basis rows

PARENTS = np.array([-1, 0, 1, 2, 0, 4, 5, 0, 7, 8, 0, 10, 11, 0, 13, 14],
                   dtype=np.int32)


def _round_up(x, m):
    return ((x + m - 1) // m) * m


def _pick_tb(batch):
    """Batch rows per grid step.

    Fill the MXU M dimension (128 rows) for real batches while keeping tiny
    test batches cheap.  When the batch allows it, keep >= 2 grid blocks so
    v7x's two TensorCores both get work on the "parallel" batch axis (the
    extra ~0.35us grid step is noise on single-core v5e/v6e).  On v6e/v7x with
    very large batches a 256-row block would also fit VMEM.
    """
    tb = min(128, _round_up(max(batch, 1), 8))
    if batch >= 16 and _round_up(batch, tb) // tb < 2:
        tb = max(8, _round_up((batch + 1) // 2, 8))
    return tb


# ----------------------------------------------------------------------------
# Fused Pallas kernel: v_posed + LBS blend + vertex transform + J-regression
# ----------------------------------------------------------------------------
def _mano_lbs_kernel(bp_ref, a_ref, basis_ref, vt_ref, w_ref, jreg_ref,
                     verts_ref, joints_ref, vcat_ref):
    # bp_ref:    (TB, 145)      f32   [beta | pose_feature]
    # a_ref:     (12*TB, 16)    f32   per-joint transform rows, (c,d)-major
    # basis_ref: (145, 3*VPAD)  bf16  [shapedirs ; posedirs], coord-lane-major
    # vt_ref:    (1, 3*VPAD)    f32   v_template, coord-lane-major
    # w_ref:     (16, VPAD)     bf16  skinning weights^T
    # jreg_ref:  (VPAD, JPAD)   bf16  vertex -> 21-joint regressor
    # verts_ref: (TB, 3*VPAD)   f32   skinned vertices, coord-lane-major
    # joints_ref:(3, TB, JPAD)  f32   regressed joints per coordinate
    # vcat_ref:  (3*TB, VPAD)   f32   VMEM scratch (skinned verts by coord)
    tb = bp_ref.shape[0]

    # v_posed = v_template + [beta | pose_feature] @ [shapedirs ; posedirs]
    # -> a single wide bf16 MXU pass, f32 accumulation.
    vp = jnp.dot(bp_ref[...].astype(jnp.bfloat16), basis_ref[...],
                 preferred_element_type=jnp.float32) + vt_ref[...]

    # LBS blend: tmat[(c,d,t), v] = sum_j A[t, j, c, d] * w[j, v], one matmul.
    tmat = jnp.dot(a_ref[...].astype(jnp.bfloat16), w_ref[...],
                   preferred_element_type=jnp.float32)          # (12*TB, VPAD)

    # Apply the blended 3x4 transforms per coordinate (translation column is a
    # plain add; no homogeneous ones-row is materialized).
    for c in range(3):
        v_c = tmat[(4 * c + 3) * tb:(4 * c + 4) * tb, :]        # translation
        for d in range(3):
            v_c = v_c + (tmat[(4 * c + d) * tb:(4 * c + d + 1) * tb, :]
                         * vp[:, d * VPAD:(d + 1) * VPAD])
        verts_ref[:, c * VPAD:(c + 1) * VPAD] = v_c
        vcat_ref[c * tb:(c + 1) * tb, :] = v_c                  # for regression

    # Joint regression on the skinned vertices: one (3*TB,VPAD)@(VPAD,JPAD)
    # bf16 MXU pass, sourced from the VMEM scratch (no in-kernel concat).
    jall = jnp.dot(vcat_ref[...].astype(jnp.bfloat16), jreg_ref[...],
                   preferred_element_type=jnp.float32)          # (3*TB, JPAD)
    for c in range(3):
        joints_ref[c] = jall[c * tb:(c + 1) * tb, :]


def mano_lbs_pallas(bp_pf, a_pack, P, tb):
    Bpad = bp_pf.shape[0]
    nb = Bpad // tb
    return pl.pallas_call(
        _mano_lbs_kernel,
        out_shape=(jax.ShapeDtypeStruct((Bpad, 3 * VPAD), jnp.float32),
                   jax.ShapeDtypeStruct((3, Bpad, JPAD), jnp.float32)),
        grid=(nb,),
        in_specs=[
            pl.BlockSpec((tb, N_BASIS), lambda b: (b, 0)),
            pl.BlockSpec((12 * tb, N_JOINT), lambda b: (b, 0)),
            pl.BlockSpec((N_BASIS, 3 * VPAD), lambda b: (0, 0)),
            pl.BlockSpec((1, 3 * VPAD), lambda b: (0, 0)),
            pl.BlockSpec((N_JOINT, VPAD), lambda b: (0, 0)),
            pl.BlockSpec((VPAD, JPAD), lambda b: (0, 0)),
        ],
        out_specs=(
            pl.BlockSpec((tb, 3 * VPAD), lambda b: (b, 0)),
            pl.BlockSpec((3, tb, JPAD), lambda b: (0, b, 0)),
        ),
        scratch_shapes=[pltpu.VMEM((3 * tb, VPAD), jnp.float32)],
        compiler_params=pltpu.CompilerParams(
            dimension_semantics=("parallel",),
            vmem_limit_bytes=32 * 1024 * 1024),
    )(bp_pf, a_pack, P["BASIS_pack"], P["VT_pack"], P["W16_pack"],
      P["JREG_pack"])


# ----------------------------------------------------------------------------
# Plain-JAX glue (small, sequential or trig-heavy parts)
# ----------------------------------------------------------------------------
def quat2mat(quat):
    q = quat / jnp.linalg.norm(quat, axis=1, keepdims=True)
    w, x, y, z = q[:, 0], q[:, 1], q[:, 2], q[:, 3]
    w2, x2, y2, z2 = w * w, x * x, y * y, z * z
    wx, wy, wz = w * x, w * y, w * z
    xy, xz, yz = x * y, x * z, y * z
    rot = jnp.stack([w2 + x2 - y2 - z2, 2 * xy - 2 * wz, 2 * wy + 2 * xz,
                     2 * wz + 2 * xy, w2 - x2 + y2 - z2, 2 * yz - 2 * wx,
                     2 * xz - 2 * wy, 2 * wx + 2 * yz, w2 - x2 - y2 + z2],
                    axis=1)
    return rot.reshape(-1, 3, 3)


def batch_rodrigues(theta):
    # theta: (N, 3) -- matches the PyTorch module's (quirky) +1e-8 epsilon.
    l1norm = jnp.linalg.norm(theta + 1e-8, axis=1)
    angle = l1norm[:, None]
    normalized = theta / angle
    angle = angle * 0.5
    quat = jnp.concatenate([jnp.cos(angle), jnp.sin(angle) * normalized], axis=1)
    return quat2mat(quat)


def batch_global_rigid_transformation(Rs, Js, parent):
    """Kinematic chain grouped by depth: 3 batched 4x4 matmuls instead of 15."""
    N = Rs.shape[0]
    parent = np.asarray(parent)
    nj = parent.shape[0]
    Js_e = Js[..., None]                                     # (N,16,3,1)

    par_idx = np.where(parent < 0, 0, parent)
    has_parent = (parent >= 0).reshape(1, nj, 1, 1)
    t_rel = jnp.where(jnp.asarray(has_parent), Js_e - Js_e[:, par_idx], Js_e)

    R_homo = jnp.concatenate([Rs, jnp.zeros((N, nj, 1, 3), jnp.float32)], axis=2)
    t_homo = jnp.concatenate([t_rel, jnp.ones((N, nj, 1, 1), jnp.float32)], axis=2)
    A_local = jnp.concatenate([R_homo, t_homo], axis=3)      # (N,16,4,4)

    depth = np.zeros(nj, dtype=np.int64)
    for i in range(1, nj):
        depth[i] = depth[parent[i]] + 1

    results = [None] * nj
    results[0] = A_local[:, 0]
    for d in range(1, int(depth.max()) + 1):
        idx = np.nonzero(depth == d)[0]
        par_res = jnp.stack([results[int(parent[i])] for i in idx], axis=1)
        res = jnp.matmul(par_res, A_local[:, idx])           # (N, len(idx), 4, 4)
        for k, i in enumerate(idx):
            results[int(i)] = res[:, k]
    results = jnp.stack(results, axis=1)                     # (N,16,4,4)

    new_J = results[:, :, :3, 3]
    Js_w0 = jnp.concatenate([Js_e, jnp.zeros((N, nj, 1, 1), jnp.float32)], axis=2)
    init_bone = jnp.matmul(results, Js_w0)
    init_bone = jnp.pad(init_bone, ((0, 0), (0, 0), (0, 0), (3, 0)))
    return new_J, results - init_bone


def mano_forward(beta, theta, quat, P, get_skin=False, use_pca=True):
    B = beta.shape[0]
    tb = _pick_tb(B)
    Bpad = _round_up(B, tb)
    nb = Bpad // tb

    # --- pose feature / rotations (tiny trig-heavy glue; plain JAX) ---
    if use_pca:
        nc = theta.shape[-1]
        pose = theta @ P["hands_comp"][:nc]                  # (B, 45)
    else:
        pose = theta
    Rs = batch_rodrigues(pose.reshape(-1, 3)).reshape(B, 15, 3, 3)
    pose_feature = (Rs - jnp.eye(3, dtype=jnp.float32)).reshape(B, N_POSEDIM)
    root = quat2mat(quat).reshape(B, 1, 3, 3)
    Rs_full = jnp.concatenate([root, Rs], axis=1)            # (B, 16, 3, 3)

    # --- joints of the *shaped* mesh via the pre-folded regressor ---
    # J_regressor is linear, so J(v_template + beta@shapedirs) collapses to a
    # (B,10)@(10,48) matmul + constant; the 778-vertex regression is done only
    # once (on the skinned mesh) inside the Pallas kernel.
    J16 = (beta @ P["SDJ16"]).reshape(B, N_JOINT, 3) + P["JTMPL16"]

    _, A = batch_global_rigid_transformation(Rs_full, J16, PARENTS)

    # --- host-side packing for the fused kernel ---
    bp_pf = jnp.concatenate([beta.astype(jnp.float32), pose_feature], axis=1)
    bp_pf = jnp.pad(bp_pf, ((0, Bpad - B), (0, 0)))          # (Bpad, 145)

    # A rows packed contiguously per batch block, (c,d)-major then batch row:
    # row ((c*4+d)*tb + t) of block b holds A[b*tb + t, :, c, d].
    A3 = jnp.pad(A[:, :, :3, :], ((0, Bpad - B), (0, 0), (0, 0), (0, 0)))
    a_pack = jnp.transpose(A3.reshape(nb, tb, N_JOINT, 3, 4),
                           (0, 3, 4, 1, 2)).reshape(nb * 12 * tb, N_JOINT)

    # --- fused kernel: v_posed + LBS + joint regression ---
    verts_cm, joints_cm = mano_lbs_pallas(bp_pf, a_pack, P, tb)

    # Module-contract (B,778,3) layout; kernel output is coord-lane-major.
    verts = jnp.transpose(
        verts_cm[:B].reshape(B, 3, VPAD)[:, :, :N_VERT], (0, 2, 1))
    joints = jnp.transpose(joints_cm[:, :B, :N_JREG], (1, 2, 0))

    if get_skin:
        return verts, joints, Rs_full
    return joints


# ----------------------------------------------------------------------------
# Pure-JAX f32 reference mirroring the PyTorch forward (for validation)
# ----------------------------------------------------------------------------
def _rigid_transform_sequential(Rs, Js, parent):
    N = Rs.shape[0]
    root_rotation = Rs[:, 0]
    Js = Js[..., None]

    def make_A(R, t):
        R_homo = jnp.concatenate([R, jnp.zeros((N, 1, 3), jnp.float32)], axis=1)
        t_homo = jnp.concatenate([t, jnp.ones((N, 1, 1), jnp.float32)], axis=1)
        return jnp.concatenate([R_homo, t_homo], axis=2)

    results = [make_A(root_rotation, Js[:, 0])]
    for i in range(1, parent.shape[0]):
        p = int(parent[i])
        A_here = make_A(Rs[:, i], Js[:, i] - Js[:, p])
        results.append(jnp.matmul(results[p], A_here))
    results = jnp.stack(results, axis=1)
    new_J = results[:, :, :3, 3]
    Js_w0 = jnp.concatenate([Js, jnp.zeros((N, N_JOINT, 1, 1), jnp.float32)],
                            axis=2)
    init_bone = jnp.matmul(results, Js_w0)
    init_bone = jnp.pad(init_bone, ((0, 0), (0, 0), (0, 0), (3, 0)))
    return new_J, results - init_bone


def reference_forward(beta, theta, quat, P):
    B = beta.shape[0]
    v_shaped = (beta @ P["shapedirs_t"]).reshape(B, N_VERT, 3) + P["v_template"]
    J = jnp.stack([v_shaped[:, :, c] @ P["J_regressor"] for c in range(3)],
                  axis=2)
    nc = theta.shape[-1]
    Rs = batch_rodrigues((theta @ P["hands_comp"][:nc]).reshape(-1, 3)
                         ).reshape(B, 15, 3, 3)
    pose_feature = (Rs - jnp.eye(3, dtype=jnp.float32)).reshape(B, N_POSEDIM)
    root = quat2mat(quat).reshape(B, 1, 3, 3)
    Rs_full = jnp.concatenate([root, Rs], axis=1)
    _, A = _rigid_transform_sequential(Rs_full, J[:, :N_JOINT, :], PARENTS)
    v_posed = (pose_feature @ P["posedirs_t"]).reshape(B, N_VERT, 3) + v_shaped
    W = jnp.broadcast_to(P["weights"], (B, N_VERT, N_JOINT))
    T = (W @ A.reshape(B, N_JOINT, 16)).reshape(B, N_VERT, 4, 4)
    vh = jnp.concatenate([v_posed, jnp.ones((B, N_VERT, 1), jnp.float32)],
                         axis=2)
    verts = jnp.einsum('bvij,bvj->bvi', T, vh)[:, :, :3]
    joints = jnp.stack([verts[:, :, c] @ P["J_regressor"] for c in range(3)],
                       axis=2)
    return verts, joints


# ----------------------------------------------------------------------------
# Deterministic synthetic parameters (shapes match the real MANO model)
# ----------------------------------------------------------------------------
def make_params():
    keys = jax.random.split(jax.random.PRNGKey(0), 8)
    v_template = 0.1 * jax.random.normal(keys[0], (N_VERT, 3), jnp.float32)
    shapedirs_t = 0.01 * jax.random.normal(keys[1], (N_BETA, N_VERT * 3),
                                           jnp.float32)
    jr = jnp.abs(jax.random.normal(keys[2], (N_VERT, N_JREG), jnp.float32))
    J_regressor = jr / jnp.sum(jr, axis=0, keepdims=True)
    posedirs_t = 0.01 * jax.random.normal(keys[3], (N_POSEDIM, N_VERT * 3),
                                          jnp.float32)
    weights = jax.nn.softmax(
        jax.random.normal(keys[4], (N_VERT, N_JOINT), jnp.float32), axis=1)
    hands_comp = 0.1 * jax.random.normal(keys[5], (45, 45), jnp.float32)

    # ---- lane-dense coordinate-major packings used by the kernel ----
    def pack_dirs(dirs_t):
        # (K, 778*3) -> (K, 3*VPAD) with lane index c*VPAD + v (zero padded)
        K = dirs_t.shape[0]
        d3 = dirs_t.reshape(K, N_VERT, 3).transpose(0, 2, 1)           # (K,3,778)
        d3 = jnp.pad(d3, ((0, 0), (0, 0), (0, VPAD - N_VERT)))
        return d3.reshape(K, 3 * VPAD)

    # Fused [shapedirs ; posedirs] basis, stored bf16 (MXU-native).
    BASIS_pack = jnp.concatenate(
        [pack_dirs(shapedirs_t), pack_dirs(posedirs_t)], axis=0
    ).astype(jnp.bfloat16)                                             # (145,2688)
    VT_pack = jnp.pad(v_template.T,
                      ((0, 0), (0, VPAD - N_VERT))).reshape(1, 3 * VPAD)
    JREG_pack = jnp.pad(J_regressor,
                        ((0, VPAD - N_VERT), (0, JPAD - N_JREG))
                        ).astype(jnp.bfloat16)                         # (896,128)
    W16_pack = jnp.pad(weights.T,
                       ((0, 0), (0, VPAD - N_VERT))).astype(jnp.bfloat16)  # (16,896)

    # J-regressor folded through shapedirs / v_template (first 16 joints),
    # so the shaped-mesh joint regression is a tiny (B,10)@(10,48) matmul.
    sd3 = shapedirs_t.reshape(N_BETA, N_VERT, 3)
    SDJ16 = jnp.einsum('kvc,vj->kjc', sd3, J_regressor[:, :N_JOINT]
                       ).reshape(N_BETA, N_JOINT * 3)
    JTMPL16 = jnp.einsum('vc,vj->jc', v_template, J_regressor[:, :N_JOINT])

    return dict(
        v_template=v_template, shapedirs_t=shapedirs_t, posedirs_t=posedirs_t,
        J_regressor=J_regressor, weights=weights, hands_comp=hands_comp,
        BASIS_pack=BASIS_pack, VT_pack=VT_pack, JREG_pack=JREG_pack,
        W16_pack=W16_pack, SDJ16=SDJ16, JTMPL16=JTMPL16,
    )


if __name__ == "__main__":
    P = make_params()

    ikeys = [jax.random.fold_in(jax.random.PRNGKey(0), i) for i in (100, 101, 102)]
    B = 2
    beta = 0.1 * jax.random.normal(ikeys[0], (B, N_BETA), jnp.float32)
    theta = 0.5 * jax.random.normal(ikeys[1], (B, 6), jnp.float32)   # 6 PCA comps
    quat = jax.random.normal(ikeys[2], (B, 4), jnp.float32)

    fwd = jax.jit(mano_forward, static_argnames=("get_skin", "use_pca"))
    verts, joints, Rs_full = fwd(beta, theta, quat, P, get_skin=True)
    jax.block_until_ready((verts, joints, Rs_full))

    # Validate the mixed-precision (bf16 MXU, f32 accumulate) kernel path
    # against the pure-f32 JAX reference.
    verts_ref, joints_ref = reference_forward(beta, theta, quat, P)
    np.testing.assert_allclose(np.asarray(verts), np.asarray(verts_ref),
                               rtol=1e-2, atol=2e-3)
    np.testing.assert_allclose(np.asarray(joints), np.asarray(joints_ref),
                               rtol=1e-2, atol=2e-3)

    assert verts.shape == (B, N_VERT, 3)
    assert joints.shape == (B, N_JREG, 3)
    assert Rs_full.shape == (B, 16, 3, 3)
    print("KERNEL_OK")
</pallas_src>

<mosaic_0001>
module attributes {stable_mosaic.version = 11 : i64} {
  func.func @_mano_lbs_kernel(%arg0: i32, %arg1: memref<8x145xf32, #tpu.memory_space<vmem>>, %arg2: memref<96x16xf32, #tpu.memory_space<vmem>>, %arg3: memref<145x2688xbf16, #tpu.memory_space<vmem>>, %arg4: memref<1x2688xf32, #tpu.memory_space<vmem>>, %arg5: memref<16x896xbf16, #tpu.memory_space<vmem>>, %arg6: memref<896x128xbf16, #tpu.memory_space<vmem>>, %arg7: memref<8x2688xf32, #tpu.memory_space<vmem>>, %arg8: memref<3x8x128xf32, #tpu.memory_space<vmem>>, %arg9: memref<24x896xf32, #tpu.memory_space<vmem>>) attributes {dimension_semantics = [#tpu.dimension_semantics<parallel>], iteration_bounds = array<i64: 1>, scalar_prefetch = 0 : i64, scratch_operands = 1 : i64, tpu.core_type = #tpu.core_type<tc>, window_params = [{transform_indices = @transform_0, window_bounds = array<i64: 8, 145>}, {transform_indices = @transform_1, window_bounds = array<i64: 96, 16>}, {pipeline_mode = #tpu.pipeline_mode<synchronous>, transform_indices = @transform_2, window_bounds = array<i64: 145, 2688>}, {pipeline_mode = #tpu.pipeline_mode<synchronous>, transform_indices = @transform_3, window_bounds = array<i64: 1, 2688>}, {pipeline_mode = #tpu.pipeline_mode<synchronous>, transform_indices = @transform_4, window_bounds = array<i64: 16, 896>}, {pipeline_mode = #tpu.pipeline_mode<synchronous>, transform_indices = @transform_5, window_bounds = array<i64: 896, 128>}, {transform_indices = @transform_6, window_bounds = array<i64: 8, 2688>}, {transform_indices = @transform_7, window_bounds = array<i64: 3, 8, 128>}]} {
    %c0 = arith.constant 0 : index
    %c0_0 = arith.constant 0 : index
    %0 = vector.load %arg1[%c0, %c0_0] : memref<8x145xf32, #tpu.memory_space<vmem>>, vector<8x145xf32>
    %1 = arith.truncf %0 : vector<8x145xf32> to vector<8x145xbf16>
    %c0_1 = arith.constant 0 : index
    %c0_2 = arith.constant 0 : index
    %2 = vector.load %arg3[%c0_1, %c0_2] : memref<145x2688xbf16, #tpu.memory_space<vmem>>, vector<145x2688xbf16>
    %cst = arith.constant dense<0.000000e+00> : vector<8x2688xf32>
    %3 = tpu.matmul %1, %2, %cst {dimension_numbers = #tpu.dot_dimension_numbers<[1], [0], [0], [1], [0, 0, 1, 1], [], []>} : vector<8x145xbf16>, vector<145x2688xbf16>, vector<8x2688xf32> -> vector<8x2688xf32>
    %c0_3 = arith.constant 0 : index
    %c0_4 = arith.constant 0 : index
    %4 = vector.load %arg4[%c0_3, %c0_4] : memref<1x2688xf32, #tpu.memory_space<vmem>>, vector<1x2688xf32>
    %5 = vector.broadcast %4 : vector<1x2688xf32> to vector<8x2688xf32>
    %6 = arith.addf %3, %5 : vector<8x2688xf32>
    %c0_5 = arith.constant 0 : index
    %c0_6 = arith.constant 0 : index
    %7 = vector.load %arg2[%c0_5, %c0_6] : memref<96x16xf32, #tpu.memory_space<vmem>>, vector<96x16xf32>
    %8 = arith.truncf %7 : vector<96x16xf32> to vector<96x16xbf16>
    %c0_7 = arith.constant 0 : index
    %c0_8 = arith.constant 0 : index
    %9 = vector.load %arg5[%c0_7, %c0_8] : memref<16x896xbf16, #tpu.memory_space<vmem>>, vector<16x896xbf16>
    %cst_9 = arith.constant dense<0.000000e+00> : vector<96x896xf32>
    %10 = tpu.matmul %8, %9, %cst_9 {dimension_numbers = #tpu.dot_dimension_numbers<[1], [0], [0], [1], [0, 0, 1, 1], [], []>} : vector<96x16xbf16>, vector<16x896xbf16>, vector<96x896xf32> -> vector<96x896xf32>
    %11 = vector.extract_strided_slice %10 {offsets = [24, 0], sizes = [8, 896], strides = [1, 1]} : vector<96x896xf32> to vector<8x896xf32>
    %12 = vector.extract_strided_slice %10 {offsets = [0, 0], sizes = [8, 896], strides = [1, 1]} : vector<96x896xf32> to vector<8x896xf32>
    %13 = vector.extract_strided_slice %6 {offsets = [0, 0], sizes = [8, 896], strides = [1, 1]} : vector<8x2688xf32> to vector<8x896xf32>
    %14 = arith.mulf %12, %13 : vector<8x896xf32>
    %15 = arith.addf %11, %14 : vector<8x896xf32>
    %16 = vector.extract_strided_slice %10 {offsets = [8, 0], sizes = [8, 896], strides = [1, 1]} : vector<96x896xf32> to vector<8x896xf32>
    %17 = vector.extract_strided_slice %6 {offsets = [0, 896], sizes = [8, 896], strides = [1, 1]} : vector<8x2688xf32> to vector<8x896xf32>
    %18 = arith.mulf %16, %17 : vector<8x896xf32>
    %19 = arith.addf %15, %18 : vector<8x896xf32>
    %20 = vector.extract_strided_slice %10 {offsets = [16, 0], sizes = [8, 896], strides = [1, 1]} : vector<96x896xf32> to vector<8x896xf32>
    %21 = vector.extract_strided_slice %6 {offsets = [0, 1792], sizes = [8, 896], strides = [1, 1]} : vector<8x2688xf32> to vector<8x896xf32>
    %22 = arith.mulf %20, %21 : vector<8x896xf32>
    %23 = arith.addf %19, %22 : vector<8x896xf32>
    %c0_10 = arith.constant 0 : index
    %c0_11 = arith.constant 0 : index
    %24 = vector.load %arg7[%c0_10, %c0_11] : memref<8x2688xf32, #tpu.memory_space<vmem>>, vector<8x896xf32>
    tpu.vector_store %arg7[%c0_10, %c0_11], %23 {strides = array<i32>} : memref<8x2688xf32, #tpu.memory_space<vmem>>, vector<8x896xf32>,
    %c0_12 = arith.constant 0 : index
    %c0_13 = arith.constant 0 : index
    %25 = vector.load %arg9[%c0_12, %c0_13] : memref<24x896xf32, #tpu.memory_space<vmem>>, vector<8x896xf32>
    tpu.vector_store %arg9[%c0_12, %c0_13], %23 {strides = array<i32>} : memref<24x896xf32, #tpu.memory_space<vmem>>, vector<8x896xf32>,
    %26 = vector.extract_strided_slice %10 {offsets = [56, 0], sizes = [8, 896], strides = [1, 1]} : vector<96x896xf32> to vector<8x896xf32>
    %27 = vector.extract_strided_slice %10 {offsets = [32, 0], sizes = [8, 896], strides = [1, 1]} : vector<96x896xf32> to vector<8x896xf32>
    %28 = vector.extract_strided_slice %6 {offsets = [0, 0], sizes = [8, 896], strides = [1, 1]} : vector<8x2688xf32> to vector<8x896xf32>
    %29 = arith.mulf %27, %28 : vector<8x896xf32>
    %30 = arith.addf %26, %29 : vector<8x896xf32>
    %31 = vector.extract_strided_slice %10 {offsets = [40, 0], sizes = [8, 896], strides = [1, 1]} : vector<96x896xf32> to vector<8x896xf32>
    %32 = vector.extract_strided_slice %6 {offsets = [0, 896], sizes = [8, 896], strides = [1, 1]} : vector<8x2688xf32> to vector<8x896xf32>
    %33 = arith.mulf %31, %32 : vector<8x896xf32>
    %34 = arith.addf %30, %33 : vector<8x896xf32>
    %35 = vector.extract_strided_slice %10 {offsets = [48, 0], sizes = [8, 896], strides = [1, 1]} : vector<96x896xf32> to vector<8x896xf32>
    %36 = vector.extract_strided_slice %6 {offsets = [0, 1792], sizes = [8, 896], strides = [1, 1]} : vector<8x2688xf32> to vector<8x896xf32>
    %37 = arith.mulf %35, %36 : vector<8x896xf32>
    %38 = arith.addf %34, %37 : vector<8x896xf32>
    %c0_14 = arith.constant 0 : index
    %c896 = arith.constant 896 : index
    %39 = vector.load %arg7[%c0_14, %c896] : memref<8x2688xf32, #tpu.memory_space<vmem>>, vector<8x896xf32>
    tpu.vector_store %arg7[%c0_14, %c896], %38 {strides = array<i32>} : memref<8x2688xf32, #tpu.memory_space<vmem>>, vector<8x896xf32>,
    %c8 = arith.constant 8 : index
    %c0_15 = arith.constant 0 : index
    %40 = vector.load %arg9[%c8, %c0_15] : memref<24x896xf32, #tpu.memory_space<vmem>>, vector<8x896xf32>
    tpu.vector_store %arg9[%c8, %c0_15], %38 {strides = array<i32>} : memref<24x896xf32, #tpu.memory_space<vmem>>, vector<8x896xf32>,
    %41 = vector.extract_strided_slice %10 {offsets = [88, 0], sizes = [8, 896], strides = [1, 1]} : vector<96x896xf32> to vector<8x896xf32>
    %42 = vector.extract_strided_slice %10 {offsets = [64, 0], sizes = [8, 896], strides = [1, 1]} : vector<96x896xf32> to vector<8x896xf32>
    %43 = vector.extract_strided_slice %6 {offsets = [0, 0], sizes = [8, 896], strides = [1, 1]} : vector<8x2688xf32> to vector<8x896xf32>
    %44 = arith.mulf %42, %43 : vector<8x896xf32>
    %45 = arith.addf %41, %44 : vector<8x896xf32>
    %46 = vector.extract_strided_slice %10 {offsets = [72, 0], sizes = [8, 896], strides = [1, 1]} : vector<96x896xf32> to vector<8x896xf32>
    %47 = vector.extract_strided_slice %6 {offsets = [0, 896], sizes = [8, 896], strides = [1, 1]} : vector<8x2688xf32> to vector<8x896xf32>
    %48 = arith.mulf %46, %47 : vector<8x896xf32>
    %49 = arith.addf %45, %48 : vector<8x896xf32>
    %50 = vector.extract_strided_slice %10 {offsets = [80, 0], sizes = [8, 896], strides = [1, 1]} : vector<96x896xf32> to vector<8x896xf32>
    %51 = vector.extract_strided_slice %6 {offsets = [0, 1792], sizes = [8, 896], strides = [1, 1]} : vector<8x2688xf32> to vector<8x896xf32>
    %52 = arith.mulf %50, %51 : vector<8x896xf32>
    %53 = arith.addf %49, %52 : vector<8x896xf32>
    %c0_16 = arith.constant 0 : index
    %c1792 = arith.constant 1792 : index
    %54 = vector.load %arg7[%c0_16, %c1792] : memref<8x2688xf32, #tpu.memory_space<vmem>>, vector<8x896xf32>
    tpu.vector_store %arg7[%c0_16, %c1792], %53 {strides = array<i32>} : memref<8x2688xf32, #tpu.memory_space<vmem>>, vector<8x896xf32>,
    %c16 = arith.constant 16 : index
    %c0_17 = arith.constant 0 : index
    %55 = vector.load %arg9[%c16, %c0_17] : memref<24x896xf32, #tpu.memory_space<vmem>>, vector<8x896xf32>
    tpu.vector_store %arg9[%c16, %c0_17], %53 {strides = array<i32>} : memref<24x896xf32, #tpu.memory_space<vmem>>, vector<8x896xf32>,
    %c0_18 = arith.constant 0 : index
    %c0_19 = arith.constant 0 : index
    %56 = vector.load %arg9[%c0_18, %c0_19] : memref<24x896xf32, #tpu.memory_space<vmem>>, vector<24x896xf32>
    %57 = arith.truncf %56 : vector<24x896xf32> to vector<24x896xbf16>
    %c0_20 = arith.constant 0 : index
    %c0_21 = arith.constant 0 : index
    %58 = vector.load %arg6[%c0_20, %c0_21] : memref<896x128xbf16, #tpu.memory_space<vmem>>, vector<896x128xbf16>
    %cst_22 = arith.constant dense<0.000000e+00> : vector<24x128xf32>
    %59 = tpu.matmul %57, %58, %cst_22 {dimension_numbers = #tpu.dot_dimension_numbers<[1], [0], [0], [1], [0, 0, 1, 1], [], []>} : vector<24x896xbf16>, vector<896x128xbf16>, vector<24x128xf32> -> vector<24x128xf32>
    %60 = vector.extract_strided_slice %59 {offsets = [0, 0], sizes = [8, 128], strides = [1, 1]} : vector<24x128xf32> to vector<8x128xf32>
    %c0_23 = arith.constant 0 : index
    %c0_24 = arith.constant 0 : index
    %c0_25 = arith.constant 0 : index
    %61 = vector.load %arg8[%c0_23, %c0_24, %c0_25] : memref<3x8x128xf32, #tpu.memory_space<vmem>>, vector<1x8x128xf32>
    %62 = vector.shape_cast %61 : vector<1x8x128xf32> to vector<8x128xf32>
    %63 = vector.shape_cast %60 : vector<8x128xf32> to vector<1x8x128xf32>
    tpu.vector_store %arg8[%c0_23, %c0_24, %c0_25], %63 {strides = array<i32>} : memref<3x8x128xf32, #tpu.memory_space<vmem>>, vector<1x8x128xf32>,
    %64 = vector.extract_strided_slice %59 {offsets = [8, 0], sizes = [8, 128], strides = [1, 1]} : vector<24x128xf32> to vector<8x128xf32>
    %c1 = arith.constant 1 : index
    %c0_26 = arith.constant 0 : index
    %c0_27 = arith.constant 0 : index
    %65 = vector.load %arg8[%c1, %c0_26, %c0_27] : memref<3x8x128xf32, #tpu.memory_space<vmem>>, vector<1x8x128xf32>
    %66 = vector.shape_cast %65 : vector<1x8x128xf32> to vector<8x128xf32>
    %67 = vector.shape_cast %64 : vector<8x128xf32> to vector<1x8x128xf32>
    tpu.vector_store %arg8[%c1, %c0_26, %c0_27], %67 {strides = array<i32>} : memref<3x8x128xf32, #tpu.memory_space<vmem>>, vector<1x8x128xf32>,
    %68 = vector.extract_strided_slice %59 {offsets = [16, 0], sizes = [8, 128], strides = [1, 1]} : vector<24x128xf32> to vector<8x128xf32>
    %c2 = arith.constant 2 : index
    %c0_28 = arith.constant 0 : index
    %c0_29 = arith.constant 0 : index
    %69 = vector.load %arg8[%c2, %c0_28, %c0_29] : memref<3x8x128xf32, #tpu.memory_space<vmem>>, vector<1x8x128xf32>
    %70 = vector.shape_cast %69 : vector<1x8x128xf32> to vector<8x128xf32>
    %71 = vector.shape_cast %68 : vector<8x128xf32> to vector<1x8x128xf32>
    tpu.vector_store %arg8[%c2, %c0_28, %c0_29], %71 {strides = array<i32>} : memref<3x8x128xf32, #tpu.memory_space<vmem>>, vector<1x8x128xf32>,
    return
  }
  func.func @transform_0(%arg0: i32) -> (i32, i32) {
    %c0_i32 = arith.constant 0 : i32
    %c0_i32_0 = arith.constant 0 : i32
    return %arg0, %c0_i32 : i32, i32
  }
  func.func @transform_1(%arg0: i32) -> (i32, i32) {
    %c0_i32 = arith.constant 0 : i32
    %c0_i32_0 = arith.constant 0 : i32
    return %arg0, %c0_i32 : i32, i32
  }
  func.func @transform_2(%arg0: i32) -> (i32, i32) {
    %c0_i32 = arith.constant 0 : i32
    %c0_i32_0 = arith.constant 0 : i32
    %c0_i32_1 = arith.constant 0 : i32
    return %c0_i32, %c0_i32_0 : i32, i32
  }
  func.func @transform_3(%arg0: i32) -> (i32, i32) {
    %c0_i32 = arith.constant 0 : i32
    %c0_i32_0 = arith.constant 0 : i32
    %c0_i32_1 = arith.constant 0 : i32
    return %c0_i32, %c0_i32_0 : i32, i32
  }
  func.func @transform_4(%arg0: i32) -> (i32, i32) {
    %c0_i32 = arith.constant 0 : i32
    %c0_i32_0 = arith.constant 0 : i32
    %c0_i32_1 = arith.constant 0 : i32
    return %c0_i32, %c0_i32_0 : i32, i32
  }
  func.func @transform_5(%arg0: i32) -> (i32, i32) {
    %c0_i32 = arith.constant 0 : i32
    %c0_i32_0 = arith.constant 0 : i32
    %c0_i32_1 = arith.constant 0 : i32
    return %c0_i32, %c0_i32_0 : i32, i32
  }
  func.func @transform_6(%arg0: i32) -> (i32, i32) {
    %c0_i32 = arith.constant 0 : i32
    %c0_i32_0 = arith.constant 0 : i32
    return %arg0, %c0_i32 : i32, i32
  }
  func.func @transform_7(%arg0: i32) -> (i32, i32, i32) {
    %c0_i32 = arith.constant 0 : i32
    %c0_i32_0 = arith.constant 0 : i32
    %c0_i32_1 = arith.constant 0 : i32
    return %c0_i32, %arg0, %c0_i32_0 : i32, i32, i32
  }
}

</mosaic_0001>

<llo_original>
// kernel: mano_forward.1
$region0: #{mano_forward.1}
  #allocation0 [shape = 'u32[]', space=smem, size = 0x4, offset = 0x4, fixed_abs, tag = 'smem constant byte address 0x4 - core index']
  #allocation1 [shape = 'u32[144,128]{1,0:T(1,128)}', space=vmem, size = 0x12000, scoped, tag = 'internal scratch']
  #allocation2 [shape = 'f32[24,896]{1,0:T(8,128)}', space=vmem, size = 0x15000, scoped, tag = 'scratch operand']
  %s0 = inlined_call_operand.vmem [shape: f32[8,145], index: 0, kind: input, shape index: {}]
  %s1 = inlined_call_operand.vmem [shape: f32[96,16], index: 1, kind: input, shape index: {}]
  %s2 = inlined_call_operand.vmem [shape: bf16[145,2688], index: 2, kind: input, shape index: {}]
  %s3 = inlined_call_operand.vmem [shape: f32[1,2688], index: 3, kind: input, shape index: {}]
  %s4 = inlined_call_operand.vmem [shape: bf16[16,896], index: 4, kind: input, shape index: {}]
  %s5 = inlined_call_operand.vmem [shape: bf16[896,128], index: 5, kind: input, shape index: {}]
  %s6 = inlined_call_operand.vmem [shape: f32[8,2688], index: 6, kind: output, shape index: {0}]
  %s7 = inlined_call_operand.vmem [shape: f32[3,8,128], index: 7, kind: output, shape index: {1}]
  %8 = xla_tuple %s6, %s7
  %s9 = sld [smem:[#allocation0]]
  $region42: #{mano_forward.1} parent=0
    _
  %s11 = ssub.s32 1, %s9
  %s12 = scalar_select 0, %s11, %s9
  // Predicated region
  $region2: #{mano_forward.1} parent=0 // pred_check
    _
  $region3: #{mano_forward.1} parent=0 // pred_check_branch
    %14 = sbr.rel (0) target = $region5
  $region4: #{mano_forward.1} parent=0 // pred_region
    _
  $region5: #{mano_forward.1} parent=0 // pred_fallthru
    _
  // Predicated region
  $region6: #{mano_forward.1} parent=0 // pred_check
    _
  $region7: #{mano_forward.1} parent=0 // pred_check_branch
    %16 = sbr.rel (0) target = $region9
  $region8: #{mano_forward.1} parent=0 // pred_region
    _
  $region9: #{mano_forward.1} parent=0 // pred_fallthru
    _
  // Predicated region
  $region10: #{mano_forward.1} parent=0 // pred_check
    _
  $region11: #{mano_forward.1} parent=0 // pred_check_branch
    %18 = sbr.rel (0) target = $region13
  $region12: #{mano_forward.1} parent=0 // pred_region
    _
  $region13: #{mano_forward.1} parent=0 // pred_fallthru
    _
  // Predicated region
  $region14: #{mano_forward.1} parent=0 // pred_check
    _
  $region15: #{mano_forward.1} parent=0 // pred_check_branch
    %20 = sbr.rel (0) target = $region17
  $region16: #{mano_forward.1} parent=0 // pred_region
    _
  $region17: #{mano_forward.1} parent=0 // pred_fallthru
    _
  // Predicated region
  $region18: #{mano_forward.1} parent=0 // pred_check
    _
  $region19: #{mano_forward.1} parent=0 // pred_check_branch
    %22 = sbr.rel (0) target = $region21
  $region20: #{mano_forward.1} parent=0 // pred_region
    _
  $region21: #{mano_forward.1} parent=0 // pred_fallthru
    _
  // Predicated region
  $region22: #{mano_forward.1} parent=0 // pred_check
    _
  $region23: #{mano_forward.1} parent=0 // pred_check_branch
    %24 = sbr.rel (0) target = $region25
  $region24: #{mano_forward.1} parent=0 // pred_region
    _
  $region25: #{mano_forward.1} parent=0 // pred_fallthru
    _
  %v26 = vld [vmem:[%s0] sm:$0xff]
  %v27 = vld [vmem:[%s0 + $0x8] sm:$0xff]
  %v28 = vpack.c.bf16 %v26, %v26
  %v29 = vpack.c.bf16 %v27, %v27
  %v30 = vld [vmem:[%s2] sm:$0xff]
  %v31 = vld [vmem:[%s2 + $0x8] sm:$0xff]
  %v32 = vld [vmem:[%s2 + $0x10] sm:$0xff]
  %v33 = vld [vmem:[%s2 + $0x18] sm:$0xff]
  %v34 = vld [vmem:[%s2 + $0x20] sm:$0xff]
  %v35 = vld [vmem:[%s2 + $0x28] sm:$0xff]
  %v36 = vld [vmem:[%s2 + $0x30] sm:$0xff]
  %v37 = vld [vmem:[%s2 + $0x38] sm:$0xff]
  %v38 = vld [vmem:[%s2 + $0x40] sm:$0xff]
  %v39 = vld [vmem:[%s2 + $0x48] sm:$0xff]
  %v40 = vld [vmem:[%s2 + $0x50] sm:$0xf]
  %v41 = vld [vmem:[%s2 + $0x54] sm:$0xff]
  %v42 = vld [vmem:[%s2 + $0x5c] sm:$0xff]
  %v43 = vld [vmem:[%s2 + $0x64] sm:$0xff]
  %v44 = vld [vmem:[%s2 + $0x6c] sm:$0xff]
  %v45 = vld [vmem:[%s2 + $0x74] sm:$0xff]
  %v46 = vld [vmem:[%s2 + $0x7c] sm:$0xff]
  %v47 = vld [vmem:[%s2 + $0x84] sm:$0xff]
  %v48 = vld [vmem:[%s2 + $0x8c] sm:$0xff]
  %v49 = vld [vmem:[%s2 + $0x94] sm:$0xff]
  %v50 = vld [vmem:[%s2 + $0x9c] sm:$0xff]
  %v51 = vld [vmem:[%s2 + $0xa4] sm:$0xf]
  %v52 = vld [vmem:[%s2 + $0xa8] sm:$0xff]
  %v53 = vld [vmem:[%s2 + $0xb0] sm:$0xff]
  %v54 = vld [vmem:[%s2 + $0xb8] sm:$0xff]
  %v55 = vld [vmem:[%s2 + $0xc0] sm:$0xff]
  %v56 = vld [vmem:[%s2 + $0xc8] sm:$0xff]
  %v57 = vld [vmem:[%s2 + $0xd0] sm:$0xff]
  %v58 = vld [vmem:[%s2 + $0xd8] sm:$0xff]
  %v59 = vld [vmem:[%s2 + $0xe0] sm:$0xff]
  %v60 = vld [vmem:[%s2 + $0xe8] sm:$0xff]
  %v61 = vld [vmem:[%s2 + $0xf0] sm:$0xff]
  %v62 = vld [vmem:[%s2 + $0xf8] sm:$0xf]
  %v63 = vld [vmem:[%s2 + $0xfc] sm:$0xff]
  %v64 = vld [vmem:[%s2 + $0x104] sm:$0xff]
  %v65 = vld [vmem:[%s2 + $0x10c] sm:$0xff]
  %v66 = vld [vmem:[%s2 + $0x114] sm:$0xff]
  %v67 = vld [vmem:[%s2 + $0x11c] sm:$0xff]
  %v68 = vld [vmem:[%s2 + $0x124] sm:$0xff]
  %v69 = vld [vmem:[%s2 + $0x12c] sm:$0xff]
  %v70 = vld [vmem:[%s2 + $0x134] sm:$0xff]
  %v71 = vld [vmem:[%s2 + $0x13c] sm:$0xff]
  %v72 = vld [vmem:[%s2 + $0x144] sm:$0xff]
  %v73 = vld [vmem:[%s2 + $0x14c] sm:$0xf]
  %v74 = vld [vmem:[%s2 + $0x150] sm:$0xff]
  %v75 = vld [vmem:[%s2 + $0x158] sm:$0xff]
  %v76 = vld [vmem:[%s2 + $0x160] sm:$0xff]
  %v77 = vld [vmem:[%s2 + $0x168] sm:$0xff]
  %v78 = vld [vmem:[%s2 + $0x170] sm:$0xff]
  %v79 = vld [vmem:[%s2 + $0x178] sm:$0xff]
  %v80 = vld [vmem:[%s2 + $0x180] sm:$0xff]
  %v81 = vld [vmem:[%s2 + $0x188] sm:$0xff]
  %v82 = vld [vmem:[%s2 + $0x190] sm:$0xff]
  %v83 = vld [vmem:[%s2 + $0x198] sm:$0xff]
  %v84 = vld [vmem:[%s2 + $0x1a0] sm:$0xf]
  %v85 = vld [vmem:[%s2 + $0x1a4] sm:$0xff]
  %v86 = vld [vmem:[%s2 + $0x1ac] sm:$0xff]
  %v87 = vld [vmem:[%s2 + $0x1b4] sm:$0xff]
  %v88 = vld [vmem:[%s2 + $0x1bc] sm:$0xff]
  %v89 = vld [vmem:[%s2 + $0x1c4] sm:$0xff]
  %v90 = vld [vmem:[%s2 + $0x1cc] sm:$0xff]
  %v91 = vld [vmem:[%s2 + $0x1d4] sm:$0xff]
  %v92 = vld [vmem:[%s2 + $0x1dc] sm:$0xff]
  %v93 = vld [vmem:[%s2 + $0x1e4] sm:$0xff]
  %v94 = vld [vmem:[%s2 + $0x1ec] sm:$0xff]
  %v95 = vld [vmem:[%s2 + $0x1f4] sm:$0xf]
  %v96 = vld [vmem:[%s2 + $0x1f8] sm:$0xff]
  %v97 = vld [vmem:[%s2 + $0x200] sm:$0xff]
  %v98 = vld [vmem:[%s2 + $0x208] sm:$0xff]
  %v99 = vld [vmem:[%s2 + $0x210] sm:$0xff]
  %v100 = vld [vmem:[%s2 + $0x218] sm:$0xff]
  %v101 = vld [vmem:[%s2 + $0x220] sm:$0xff]
  %v102 = vld [vmem:[%s2 + $0x228] sm:$0xff]
  %v103 = vld [vmem:[%s2 + $0x230] sm:$0xff]
  %v104 = vld [vmem:[%s2 + $0x238] sm:$0xff]
  %v105 = vld [vmem:[%s2 + $0x240] sm:$0xff]
  %v106 = vld [vmem:[%s2 + $0x248] sm:$0xf]
  %v107 = vld [vmem:[%s2 + $0x24c] sm:$0xff]
  %v108 = vld [vmem:[%s2 + $0x254] sm:$0xff]
  %v109 = vld [vmem:[%s2 + $0x25c] sm:$0xff]
  %v110 = vld [vmem:[%s2 + $0x264] sm:$0xff]
  %v111 = vld [vmem:[%s2 + $0x26c] sm:$0xff]
  %v112 = vld [vmem:[%s2 + $0x274] sm:$0xff]
  %v113 = vld [vmem:[%s2 + $0x27c] sm:$0xff]
  %v114 = vld [vmem:[%s2 + $0x284] sm:$0xff]
  %v115 = vld [vmem:[%s2 + $0x28c] sm:$0xff]
  %v116 = vld [vmem:[%s2 + $0x294] sm:$0xff]
  %v117 = vld [vmem:[%s2 + $0x29c] sm:$0xf]
  %v118 = vld [vmem:[%s2 + $0x2a0] sm:$0xff]
  %v119 = vld [vmem:[%s2 + $0x2a8] sm:$0xff]
  %v120 = vld [vmem:[%s2 + $0x2b0] sm:$0xff]
  %v121 = vld [vmem:[%s2 + $0x2b8] sm:$0xff]
  %v122 = vld [vmem:[%s2 + $0x2c0] sm:$0xff]
  %v123 = vld [vmem:[%s2 + $0x2c8] sm:$0xff]
  %v124 = vld [vmem:[%s2 + $0x2d0] sm:$0xff]
  %v125 = vld [vmem:[%s2 + $0x2d8] sm:$0xff]
  %v126 = vld [vmem:[%s2 + $0x2e0] sm:$0xff]
  %v127 = vld [vmem:[%s2 + $0x2e8] sm:$0xff]
  %v128 = vld [vmem:[%s2 + $0x2f0] sm:$0xf]
  %v129 = vld [vmem:[%s2 + $0x2f4] sm:$0xff]
  %v130 = vld [vmem:[%s2 + $0x2fc] sm:$0xff]
  %v131 = vld [vmem:[%s2 + $0x304] sm:$0xff]
  %v132 = vld [vmem:[%s2 + $0x30c] sm:$0xff]
  %v133 = vld [vmem:[%s2 + $0x314] sm:$0xff]
  %v134 = vld [vmem:[%s2 + $0x31c] sm:$0xff]
  %v135 = vld [vmem:[%s2 + $0x324] sm:$0xff]
  %v136 = vld [vmem:[%s2 + $0x32c] sm:$0xff]
  %v137 = vld [vmem:[%s2 + $0x334] sm:$0xff]
  %v138 = vld [vmem:[%s2 + $0x33c] sm:$0xff]
  %v139 = vld [vmem:[%s2 + $0x344] sm:$0xf]
  %v140 = vld [vmem:[%s2 + $0x348] sm:$0xff]
  %v141 = vld [vmem:[%s2 + $0x350] sm:$0xff]
  %v142 = vld [vmem:[%s2 + $0x358] sm:$0xff]
  %v143 = vld [vmem:[%s2 + $0x360] sm:$0xff]
  %v144 = vld [vmem:[%s2 + $0x368] sm:$0xff]
  %v145 = vld [vmem:[%s2 + $0x370] sm:$0xff]
  %v146 = vld [vmem:[%s2 + $0x378] sm:$0xff]
  %v147 = vld [vmem:[%s2 + $0x380] sm:$0xff]
  %v148 = vld [vmem:[%s2 + $0x388] sm:$0xff]
  %v149 = vld [vmem:[%s2 + $0x390] sm:$0xff]
  %v150 = vld [vmem:[%s2 + $0x398] sm:$0xf]
  %v151 = vld [vmem:[%s2 + $0x39c] sm:$0xff]
  %v152 = vld [vmem:[%s2 + $0x3a4] sm:$0xff]
  %v153 = vld [vmem:[%s2 + $0x3ac] sm:$0xff]
  %v154 = vld [vmem:[%s2 + $0x3b4] sm:$0xff]
  %v155 = vld [vmem:[%s2 + $0x3bc] sm:$0xff]
  %v156 = vld [vmem:[%s2 + $0x3c4] sm:$0xff]
  %v157 = vld [vmem:[%s2 + $0x3cc] sm:$0xff]
  %v158 = vld [vmem:[%s2 + $0x3d4] sm:$0xff]
  %v159 = vld [vmem:[%s2 + $0x3dc] sm:$0xff]
  %v160 = vld [vmem:[%s2 + $0x3e4] sm:$0xff]
  %v161 = vld [vmem:[%s2 + $0x3ec] sm:$0xf]
  %v162 = vld [vmem:[%s2 + $0x3f0] sm:$0xff]
  %v163 = vld [vmem:[%s2 + $0x3f8] sm:$0xff]
  %v164 = vld [vmem:[%s2 + $0x400] sm:$0xff]
  %v165 = vld [vmem:[%s2 + $0x408] sm:$0xff]
  %v166 = vld [vmem:[%s2 + $0x410] sm:$0xff]
  %v167 = vld [vmem:[%s2 + $0x418] sm:$0xff]
  %v168 = vld [vmem:[%s2 + $0x420] sm:$0xff]
  %v169 = vld [vmem:[%s2 + $0x428] sm:$0xff]
  %v170 = vld [vmem:[%s2 + $0x430] sm:$0xff]
  %v171 = vld [vmem:[%s2 + $0x438] sm:$0xff]
  %v172 = vld [vmem:[%s2 + $0x440] sm:$0xf]
  %v173 = vld [vmem:[%s2 + $0x444] sm:$0xff]
  %v174 = vld [vmem:[%s2 + $0x44c] sm:$0xff]
  %v175 = vld [vmem:[%s2 + $0x454] sm:$0xff]
  %v176 = vld [vmem:[%s2 + $0x45c] sm:$0xff]
  %v177 = vld [vmem:[%s2 + $0x464] sm:$0xff]
  %v178 = vld [vmem:[%s2 + $0x46c] sm:$0xff]
  %v179 = vld [vmem:[%s2 + $0x474] sm:$0xff]
  %v180 = vld [vmem:[%s2 + $0x47c] sm:$0xff]
  %v181 = vld [vmem:[%s2 + $0x484] sm:$0xff]
  %v182 = vld [vmem:[%s2 + $0x48c] sm:$0xff]
  %v183 = vld [vmem:[%s2 + $0x494] sm:$0xf]
  %v184 = vld [vmem:[%s2 + $0x498] sm:$0xff]
  %v185 = vld [vmem:[%s2 + $0x4a0] sm:$0xff]
  %v186 = vld [vmem:[%s2 + $0x4a8] sm:$0xff]
  %v187 = vld [vmem:[%s2 + $0x4b0] sm:$0xff]
  %v188 = vld [vmem:[%s2 + $0x4b8] sm:$0xff]
  %v189 = vld [vmem:[%s2 + $0x4c0] sm:$0xff]
  %v190 = vld [vmem:[%s2 + $0x4c8] sm:$0xff]
  %v191 = vld [vmem:[%s2 + $0x4d0] sm:$0xff]
  %v192 = vld [vmem:[%s2 + $0x4d8] sm:$0xff]
  %v193 = vld [vmem:[%s2 + $0x4e0] sm:$0xff]
  %v194 = vld [vmem:[%s2 + $0x4e8] sm:$0xf]
  %v195 = vld [vmem:[%s2 + $0x4ec] sm:$0xff]
  %v196 = vld [vmem:[%s2 + $0x4f4] sm:$0xff]
  %v197 = vld [vmem:[%s2 + $0x4fc] sm:$0xff]
  %v198 = vld [vmem:[%s2 + $0x504] sm:$0xff]
  %v199 = vld [vmem:[%s2 + $0x50c] sm:$0xff]
  %v200 = vld [vmem:[%s2 + $0x514] sm:$0xff]
  %v201 = vld [vmem:[%s2 + $0x51c] sm:$0xff]
  %v202 = vld [vmem:[%s2 + $0x524] sm:$0xff]
  %v203 = vld [vmem:[%s2 + $0x52c] sm:$0xff]
  %v204 = vld [vmem:[%s2 + $0x534] sm:$0xff]
  %v205 = vld [vmem:[%s2 + $0x53c] sm:$0xf]
  %v206 = vld [vmem:[%s2 + $0x540] sm:$0xff]
  %v207 = vld [vmem:[%s2 + $0x548] sm:$0xff]
  %v208 = vld [vmem:[%s2 + $0x550] sm:$0xff]
  %v209 = vld [vmem:[%s2 + $0x558] sm:$0xff]
  %v210 = vld [vmem:[%s2 + $0x560] sm:$0xff]
  %v211 = vld [vmem:[%s2 + $0x568] sm:$0xff]
  %v212 = vld [vmem:[%s2 + $0x570] sm:$0xff]
  %v213 = vld [vmem:[%s2 + $0x578] sm:$0xff]
  %v214 = vld [vmem:[%s2 + $0x580] sm:$0xff]
  %v215 = vld [vmem:[%s2 + $0x588] sm:$0xff]
  %v216 = vld [vmem:[%s2 + $0x590] sm:$0xf]
  %v217 = vld [vmem:[%s2 + $0x594] sm:$0xff]
  %v218 = vld [vmem:[%s2 + $0x59c] sm:$0xff]
  %v219 = vld [vmem:[%s2 + $0x5a4] sm:$0xff]
  %v220 = vld [vmem:[%s2 + $0x5ac] sm:$0xff]
  %v221 = vld [vmem:[%s2 + $0x5b4] sm:$0xff]
  %v222 = vld [vmem:[%s2 + $0x5bc] sm:$0xff]
  %v223 = vld [vmem:[%s2 + $0x5c4] sm:$0xff]
  %v224 = vld [vmem:[%s2 + $0x5cc] sm:$0xff]
  %v225 = vld [vmem:[%s2 + $0x5d4] sm:$0xff]
  %v226 = vld [vmem:[%s2 + $0x5dc] sm:$0xff]
  %v227 = vld [vmem:[%s2 + $0x5e4] sm:$0xf]
  %v228 = vld [vmem:[%s2 + $0x5e8] sm:$0x11]
  %v229 = vld [vmem:[%s2 + $0x5f0] sm:$0x11]
  %v230 = vld [vmem:[%s2 + $0x5f8] sm:$0x11]
  %v231 = vld [vmem:[%s2 + $0x600] sm:$0x11]
  %v232 = vld [vmem:[%s2 + $0x608] sm:$0x11]
  %v233 = vld [vmem:[%s2 + $0x610] sm:$0x11]
  %v234 = vld [vmem:[%s2 + $0x618] sm:$0x11]
  %v235 = vld [vmem:[%s2 + $0x620] sm:$0x11]
  %v236 = vld [vmem:[%s2 + $0x628] sm:$0x11]
  %v237 = vld [vmem:[%s2 + $0x630] sm:$0x11]
  %v238 = vld [vmem:[%s2 + $0x638] sm:$0x1]
  %v239 = vld [vmem:[%s3] sm:$0xff]
  %v240 = vld [vmem:[%s3 + $0x8] sm:$0xff]
  %v241 = vld [vmem:[%s3 + $0x10] sm:$0x1f]
  %v245 = vlaneseq
  %v246 = vshrl.u32 %v245, 7
  %v247 = vsub.s32 0, %v246
  %v248 = vrot.slane %v239, %v247
  %v249 = vlaneseq
  %v250 = vshrl.u32 %v249, 7
  %v251 = vsub.s32 1, %v250
  %v252 = vrot.slane %v239, %v251
  %v253 = vlaneseq
  %v254 = vshrl.u32 %v253, 7
  %v255 = vsub.s32 2, %v254
  %v256 = vrot.slane %v239, %v255
  %v257 = vlaneseq
  %v258 = vshrl.u32 %v257, 7
  %v259 = vsub.s32 3, %v258
  %v260 = vrot.slane %v239, %v259
  %v261 = vlaneseq
  %v262 = vshrl.u32 %v261, 7
  %v263 = vsub.s32 4, %v262
  %v264 = vrot.slane %v239, %v263
  %v265 = vlaneseq
  %v266 = vshrl.u32 %v265, 7
  %v267 = vsub.s32 5, %v266
  %v268 = vrot.slane %v239, %v267
  %v269 = vlaneseq
  %v270 = vshrl.u32 %v269, 7
  %v271 = vsub.s32 6, %v270
  %v272 = vrot.slane %v239, %v271
  %v273 = vlaneseq
  %v274 = vshrl.u32 %v273, 7
  %v275 = vsub.s32 7, %v274
  %v276 = vrot.slane %v239, %v275
  %v277 = vlaneseq
  %v278 = vshrl.u32 %v277, 7
  %v279 = vsub.s32 0, %v278
  %v280 = vrot.slane %v240, %v279
  %v281 = vlaneseq
  %v282 = vshrl.u32 %v281, 7
  %v283 = vsub.s32 1, %v282
  %v284 = vrot.slane %v240, %v283
  %v285 = vlaneseq
  %v286 = vshrl.u32 %v285, 7
  %v287 = vsub.s32 2, %v286
  %v288 = vrot.slane %v240, %v287
  %v289 = vlaneseq
  %v290 = vshrl.u32 %v289, 7
  %v291 = vsub.s32 3, %v290
  %v292 = vrot.slane %v240, %v291
  %v293 = vlaneseq
  %v294 = vshrl.u32 %v293, 7
  %v295 = vsub.s32 4, %v294
  %v296 = vrot.slane %v240, %v295
  %v297 = vlaneseq
  %v298 = vshrl.u32 %v297, 7
  %v299 = vsub.s32 5, %v298
  %v300 = vrot.slane %v240, %v299
  %v301 = vlaneseq
  %v302 = vshrl.u32 %v301, 7
  %v303 = vsub.s32 6, %v302
  %v304 = vrot.slane %v240, %v303
  %v305 = vlaneseq
  %v306 = vshrl.u32 %v305, 7
  %v307 = vsub.s32 7, %v306
  %v308 = vrot.slane %v240, %v307
  %v309 = vlaneseq
  %v310 = vshrl.u32 %v309, 7
  %v311 = vsub.s32 0, %v310
  %v312 = vrot.slane %v241, %v311
  %v313 = vlaneseq
  %v314 = vshrl.u32 %v313, 7
  %v315 = vsub.s32 1, %v314
  %v316 = vrot.slane %v241, %v315
  %v317 = vlaneseq
  %v318 = vshrl.u32 %v317, 7
  %v319 = vsub.s32 2, %v318
  %v320 = vrot.slane %v241, %v319
  %v321 = vlaneseq
  %v322 = vshrl.u32 %v321, 7
  %v323 = vsub.s32 3, %v322
  %v324 = vrot.slane %v241, %v323
  %v325 = vlaneseq
  %v326 = vshrl.u32 %v325, 7
  %v327 = vsub.s32 4, %v326
  %v328 = vrot.slane %v241, %v327
  %v559 = vunpack.c.l.b16 %v30
  %v560 = vunpack.c.h.b16 %v30
  %v561 = vunpack.c.l.b16 %v31
  %v562 = vunpack.c.h.b16 %v31
  %v563 = vunpack.c.l.b16 %v32
  %v564 = vunpack.c.h.b16 %v32
  %v565 = vunpack.c.l.b16 %v33
  %v566 = vunpack.c.h.b16 %v33
  %v567 = vunpack.c.l.b16 %v34
  %v568 = vunpack.c.h.b16 %v34
  %v569 = vunpack.c.l.b16 %v35
  %v570 = vunpack.c.h.b16 %v35
  %v571 = vunpack.c.l.b16 %v36
  %v572 = vunpack.c.h.b16 %v36
  %v573 = vunpack.c.l.b16 %v37
  %v574 = vunpack.c.h.b16 %v37
  %v575 = vunpack.c.l.b16 %v38
  %v576 = vunpack.c.h.b16 %v38
  %v577 = vunpack.c.l.b16 %v39
  %v578 = vunpack.c.h.b16 %v39
  %v579 = vunpack.c.l.b16 %v40
  %v580 = vunpack.c.l.b16 %v41
  %v581 = vunpack.c.h.b16 %v41
  %v582 = vunpack.c.l.b16 %v42
  %v583 = vunpack.c.h.b16 %v42
  %v584 = vunpack.c.l.b16 %v43
  %v585 = vunpack.c.h.b16 %v43
  %v586 = vunpack.c.l.b16 %v44
  %v587 = vunpack.c.h.b16 %v44
  %v588 = vunpack.c.l.b16 %v45
  %v589 = vunpack.c.h.b16 %v45
  %v590 = vunpack.c.l.b16 %v46
  %v591 = vunpack.c.h.b16 %v46
  %v592 = vunpack.c.l.b16 %v47
  %v593 = vunpack.c.h.b16 %v47
  %v594 = vunpack.c.l.b16 %v48
  %v595 = vunpack.c.h.b16 %v48
  %v596 = vunpack.c.l.b16 %v49
  %v597 = vunpack.c.h.b16 %v49
  %v598 = vunpack.c.l.b16 %v50
  %v599 = vunpack.c.h.b16 %v50
  %v600 = vunpack.c.l.b16 %v51
  %v601 = vunpack.c.l.b16 %v52
  %v602 = vunpack.c.h.b16 %v52
  %v603 = vunpack.c.l.b16 %v53
  %v604 = vunpack.c.h.b16 %v53
  %v605 = vunpack.c.l.b16 %v54
  %v606 = vunpack.c.h.b16 %v54
  %v607 = vunpack.c.l.b16 %v55
  %v608 = vunpack.c.h.b16 %v55
  %v609 = vunpack.c.l.b16 %v56
  %v610 = vunpack.c.h.b16 %v56
  %v611 = vunpack.c.l.b16 %v57
  %v612 = vunpack.c.h.b16 %v57
  %v613 = vunpack.c.l.b16 %v58
  %v614 = vunpack.c.h.b16 %v58
  %v615 = vunpack.c.l.b16 %v59
  %v616 = vunpack.c.h.b16 %v59
  %v617 = vunpack.c.l.b16 %v60
  %v618 = vunpack.c.h.b16 %v60
  %v619 = vunpack.c.l.b16 %v61
  %v620 = vunpack.c.h.b16 %v61
  %v621 = vunpack.c.l.b16 %v62
  %v622 = vunpack.c.l.b16 %v63
  %v623 = vunpack.c.h.b16 %v63
  %v624 = vunpack.c.l.b16 %v64
  %v625 = vunpack.c.h.b16 %v64
  %v626 = vunpack.c.l.b16 %v65
  %v627 = vunpack.c.h.b16 %v65
  %v628 = vunpack.c.l.b16 %v66
  %v629 = vunpack.c.h.b16 %v66
  %v630 = vunpack.c.l.b16 %v67
  %v631 = vunpack.c.h.b16 %v67
  %v632 = vunpack.c.l.b16 %v68
  %v633 = vunpack.c.h.b16 %v68
  %v634 = vunpack.c.l.b16 %v69
  %v635 = vunpack.c.h.b16 %v69
  %v636 = vunpack.c.l.b16 %v70
  %v637 = vunpack.c.h.b16 %v70
  %v638 = vunpack.c.l.b16 %v71
  %v639 = vunpack.c.h.b16 %v71
  %v640 = vunpack.c.l.b16 %v72
  %v641 = vunpack.c.h.b16 %v72
  %v642 = vunpack.c.l.b16 %v73
  %v643 = vunpack.c.l.b16 %v74
  %v644 = vunpack.c.h.b16 %v74
  %v645 = vunpack.c.l.b16 %v75
  %v646 = vunpack.c.h.b16 %v75
  %v647 = vunpack.c.l.b16 %v76
  %v648 = vunpack.c.h.b16 %v76
  %v649 = vunpack.c.l.b16 %v77
  %v650 = vunpack.c.h.b16 %v77
  %v651 = vunpack.c.l.b16 %v78
  %v652 = vunpack.c.h.b16 %v78
  %v653 = vunpack.c.l.b16 %v79
  %v654 = vunpack.c.h.b16 %v79
  %v655 = vunpack.c.l.b16 %v80
  %v656 = vunpack.c.h.b16 %v80
  %v657 = vunpack.c.l.b16 %v81
  %v658 = vunpack.c.h.b16 %v81
  %v659 = vunpack.c.l.b16 %v82
  %v660 = vunpack.c.h.b16 %v82
  %v661 = vunpack.c.l.b16 %v83
  %v662 = vunpack.c.h.b16 %v83
  %v663 = vunpack.c.l.b16 %v84
  %v664 = vunpack.c.l.b16 %v85
  %v665 = vunpack.c.h.b16 %v85
  %v666 = vunpack.c.l.b16 %v86
  %v667 = vunpack.c.h.b16 %v86
  %v668 = vunpack.c.l.b16 %v87
  %v669 = vunpack.c.h.b16 %v87
  %v670 = vunpack.c.l.b16 %v88
  %v671 = vunpack.c.h.b16 %v88
  %v672 = vunpack.c.l.b16 %v89
  %v673 = vunpack.c.h.b16 %v89
  %v674 = vunpack.c.l.b16 %v90
  %v675 = vunpack.c.h.b16 %v90
  %v676 = vunpack.c.l.b16 %v91
  %v677 = vunpack.c.h.b16 %v91
  %v678 = vunpack.c.l.b16 %v92
  %v679 = vunpack.c.h.b16 %v92
  %v680 = vunpack.c.l.b16 %v93
  %v681 = vunpack.c.h.b16 %v93
  %v682 = vunpack.c.l.b16 %v94
  %v683 = vunpack.c.h.b16 %v94
  %v684 = vunpack.c.l.b16 %v95
  %v685 = vunpack.c.l.b16 %v96
  %v686 = vunpack.c.h.b16 %v96
  %v687 = vunpack.c.l.b16 %v97
  %v688 = vunpack.c.h.b16 %v97
  %v689 = vunpack.c.l.b16 %v98
  %v690 = vunpack.c.h.b16 %v98
  %v691 = vunpack.c.l.b16 %v99
  %v692 = vunpack.c.h.b16 %v99
  %v693 = vunpack.c.l.b16 %v100
  %v694 = vunpack.c.h.b16 %v100
  %v695 = vunpack.c.l.b16 %v101
  %v696 = vunpack.c.h.b16 %v101
  %v697 = vunpack.c.l.b16 %v102
  %v698 = vunpack.c.h.b16 %v102
  %v699 = vunpack.c.l.b16 %v103
  %v700 = vunpack.c.h.b16 %v103
  %v701 = vunpack.c.l.b16 %v104
  %v702 = vunpack.c.h.b16 %v104
  %v703 = vunpack.c.l.b16 %v105
  %v704 = vunpack.c.h.b16 %v105
  %v705 = vunpack.c.l.b16 %v106
  %v706 = vunpack.c.l.b16 %v107
  %v707 = vunpack.c.h.b16 %v107
  %v708 = vunpack.c.l.b16 %v108
  %v709 = vunpack.c.h.b16 %v108
  %v710 = vunpack.c.l.b16 %v109
  %v711 = vunpack.c.h.b16 %v109
  %v712 = vunpack.c.l.b16 %v110
  %v713 = vunpack.c.h.b16 %v110
  %v714 = vunpack.c.l.b16 %v111
  %v715 = vunpack.c.h.b16 %v111
  %v716 = vunpack.c.l.b16 %v112
  %v717 = vunpack.c.h.b16 %v112
  %v718 = vunpack.c.l.b16 %v113
  %v719 = vunpack.c.h.b16 %v113
  %v720 = vunpack.c.l.b16 %v114
  %v721 = vunpack.c.h.b16 %v114
  %v722 = vunpack.c.l.b16 %v115
  %v723 = vunpack.c.h.b16 %v115
  %v724 = vunpack.c.l.b16 %v116
  %v725 = vunpack.c.h.b16 %v116
  %v726 = vunpack.c.l.b16 %v117
  %v727 = vunpack.c.l.b16 %v118
  %v728 = vunpack.c.h.b16 %v118
  %v729 = vunpack.c.l.b16 %v119
  %v730 = vunpack.c.h.b16 %v119
  %v731 = vunpack.c.l.b16 %v120
  %v732 = vunpack.c.h.b16 %v120
  %v733 = vunpack.c.l.b16 %v121
  %v734 = vunpack.c.h.b16 %v121
  %v735 = vunpack.c.l.b16 %v122
  %v736 = vunpack.c.h.b16 %v122
  %v737 = vunpack.c.l.b16 %v123
  %v738 = vunpack.c.h.b16 %v123
  %v739 = vunpack.c.l.b16 %v124
  %v740 = vunpack.c.h.b16 %v124
  %v741 = vunpack.c.l.b16 %v125
  %v742 = vunpack.c.h.b16 %v125
  %v743 = vunpack.c.l.b16 %v126
  %v744 = vunpack.c.h.b16 %v126
  %v745 = vunpack.c.l.b16 %v127
  %v746 = vunpack.c.h.b16 %v127
  %v747 = vunpack.c.l.b16 %v128
  %v748 = vunpack.c.l.b16 %v129
  %v749 = vunpack.c.h.b16 %v129
  %v750 = vunpack.c.l.b16 %v130
  %v751 = vunpack.c.h.b16 %v130
  %v752 = vunpack.c.l.b16 %v131
  %v753 = vunpack.c.h.b16 %v131
  %v754 = vunpack.c.l.b16 %v132
  %v755 = vunpack.c.h.b16 %v132
  %v756 = vunpack.c.l.b16 %v133
  %v757 = vunpack.c.h.b16 %v133
  %v758 = vunpack.c.l.b16 %v134
  %v759 = vunpack.c.h.b16 %v134
  %v760 = vunpack.c.l.b16 %v135
  %v761 = vunpack.c.h.b16 %v135
  %v762 = vunpack.c.l.b16 %v136
  %v763 = vunpack.c.h.b16 %v136
  %v764 = vunpack.c.l.b16 %v137
  %v765 = vunpack.c.h.b16 %v137
  %v766 = vunpack.c.l.b16 %v138
  %v767 = vunpack.c.h.b16 %v138
  %v768 = vunpack.c.l.b16 %v139
  %v769 = vunpack.c.l.b16 %v140
  %v770 = vunpack.c.h.b16 %v140
  %v771 = vunpack.c.l.b16 %v141
  %v772 = vunpack.c.h.b16 %v141
  %v773 = vunpack.c.l.b16 %v142
  %v774 = vunpack.c.h.b16 %v142
  %v775 = vunpack.c.l.b16 %v143
  %v776 = vunpack.c.h.b16 %v143
  %v777 = vunpack.c.l.b16 %v144
  %v778 = vunpack.c.h.b16 %v144
  %v779 = vunpack.c.l.b16 %v145
  %v780 = vunpack.c.h.b16 %v145
  %v781 = vunpack.c.l.b16 %v146
  %v782 = vunpack.c.h.b16 %v146
  %v783 = vunpack.c.l.b16 %v147
  %v784 = vunpack.c.h.b16 %v147
  %v785 = vunpack.c.l.b16 %v148
  %v786 = vunpack.c.h.b16 %v148
  %v787 = vunpack.c.l.b16 %v149
  %v788 = vunpack.c.h.b16 %v149
  %v789 = vunpack.c.l.b16 %v150
  %v790 = vunpack.c.l.b16 %v151
  %v791 = vunpack.c.h.b16 %v151
  %v792 = vunpack.c.l.b16 %v152
  %v793 = vunpack.c.h.b16 %v152
  %v794 = vunpack.c.l.b16 %v153
  %v795 = vunpack.c.h.b16 %v153
  %v796 = vunpack.c.l.b16 %v154
  %v797 = vunpack.c.h.b16 %v154
  %v798 = vunpack.c.l.b16 %v155
  %v799 = vunpack.c.h.b16 %v155
  %v800 = vunpack.c.l.b16 %v156
  %v801 = vunpack.c.h.b16 %v156
  %v802 = vunpack.c.l.b16 %v157
  %v803 = vunpack.c.h.b16 %v157
  %v804 = vunpack.c.l.b16 %v158
  %v805 = vunpack.c.h.b16 %v158
  %v806 = vunpack.c.l.b16 %v159
  %v807 = vunpack.c.h.b16 %v159
  %v808 = vunpack.c.l.b16 %v160
  %v809 = vunpack.c.h.b16 %v160
  %v810 = vunpack.c.l.b16 %v161
  %v811 = vunpack.c.l.b16 %v162
  %v812 = vunpack.c.h.b16 %v162
  %v813 = vunpack.c.l.b16 %v163
  %v814 = vunpack.c.h.b16 %v163
  %v815 = vunpack.c.l.b16 %v164
  %v816 = vunpack.c.h.b16 %v164
  %v817 = vunpack.c.l.b16 %v165
  %v818 = vunpack.c.h.b16 %v165
  %v819 = vunpack.c.l.b16 %v166
  %v820 = vunpack.c.h.b16 %v166
  %v821 = vunpack.c.l.b16 %v167
  %v822 = vunpack.c.h.b16 %v167
  %v823 = vunpack.c.l.b16 %v168
  %v824 = vunpack.c.h.b16 %v168
  %v825 = vunpack.c.l.b16 %v169
  %v826 = vunpack.c.h.b16 %v169
  %v827 = vunpack.c.l.b16 %v170
  %v828 = vunpack.c.h.b16 %v170
  %v829 = vunpack.c.l.b16 %v171
  %v830 = vunpack.c.h.b16 %v171
  %v831 = vunpack.c.l.b16 %v172
  %v832 = vunpack.c.l.b16 %v173
  %v833 = vunpack.c.h.b16 %v173
  %v834 = vunpack.c.l.b16 %v174
  %v835 = vunpack.c.h.b16 %v174
  %v836 = vunpack.c.l.b16 %v175
  %v837 = vunpack.c.h.b16 %v175
  %v838 = vunpack.c.l.b16 %v176
  %v839 = vunpack.c.h.b16 %v176
  %v840 = vunpack.c.l.b16 %v177
  %v841 = vunpack.c.h.b16 %v177
  %v842 = vunpack.c.l.b16 %v178
  %v843 = vunpack.c.h.b16 %v178
  %v844 = vunpack.c.l.b16 %v179
  %v845 = vunpack.c.h.b16 %v179
  %v846 = vunpack.c.l.b16 %v180
  %v847 = vunpack.c.h.b16 %v180
  %v848 = vunpack.c.l.b16 %v181
  %v849 = vunpack.c.h.b16 %v181
  %v850 = vunpack.c.l.b16 %v182
  %v851 = vunpack.c.h.b16 %v182
  %v852 = vunpack.c.l.b16 %v183
  %v853 = vunpack.c.l.b16 %v184
  %v854 = vunpack.c.h.b16 %v184
  %v855 = vunpack.c.l.b16 %v185
  %v856 = vunpack.c.h.b16 %v185
  %v857 = vunpack.c.l.b16 %v186
  %v858 = vunpack.c.h.b16 %v186
  %v859 = vunpack.c.l.b16 %v187
  %v860 = vunpack.c.h.b16 %v187
  %v861 = vunpack.c.l.b16 %v188
  %v862 = vunpack.c.h.b16 %v188
  %v863 = vunpack.c.l.b16 %v189
  %v864 = vunpack.c.h.b16 %v189
  %v865 = vunpack.c.l.b16 %v190
  %v866 = vunpack.c.h.b16 %v190
  %v867 = vunpack.c.l.b16 %v191
  %v868 = vunpack.c.h.b16 %v191
  %v869 = vunpack.c.l.b16 %v192
  %v870 = vunpack.c.h.b16 %v192
  %v871 = vunpack.c.l.b16 %v193
  %v872 = vunpack.c.h.b16 %v193
  %v873 = vunpack.c.l.b16 %v194
  %v874 = vunpack.c.l.b16 %v195
  %v875 = vunpack.c.h.b16 %v195
  %v876 = vunpack.c.l.b16 %v196
  %v877 = vunpack.c.h.b16 %v196
  %v878 = vunpack.c.l.b16 %v197
  %v879 = vunpack.c.h.b16 %v197
  %v880 = vunpack.c.l.b16 %v198
  %v881 = vunpack.c.h.b16 %v198
  %v882 = vunpack.c.l.b16 %v199
  %v883 = vunpack.c.h.b16 %v199
  %v884 = vunpack.c.l.b16 %v200
  %v885 = vunpack.c.h.b16 %v200
  %v886 = vunpack.c.l.b16 %v201
  %v887 = vunpack.c.h.b16 %v201
  %v888 = vunpack.c.l.b16 %v202
  %v889 = vunpack.c.h.b16 %v202
  %v890 = vunpack.c.l.b16 %v203
  %v891 = vunpack.c.h.b16 %v203
  %v892 = vunpack.c.l.b16 %v204
  %v893 = vunpack.c.h.b16 %v204
  %v894 = vunpack.c.l.b16 %v205
  %v895 = vunpack.c.l.b16 %v206
  %v896 = vunpack.c.h.b16 %v206
  %v897 = vunpack.c.l.b16 %v207
  %v898 = vunpack.c.h.b16 %v207
  %v899 = vunpack.c.l.b16 %v208
  %v900 = vunpack.c.h.b16 %v208
  %v901 = vunpack.c.l.b16 %v209
  %v902 = vunpack.c.h.b16 %v209
  %v903 = vunpack.c.l.b16 %v210
  %v904 = vunpack.c.h.b16 %v210
  %v905 = vunpack.c.l.b16 %v211
  %v906 = vunpack.c.h.b16 %v211
  %v907 = vunpack.c.l.b16 %v212
  %v908 = vunpack.c.h.b16 %v212
  %v909 = vunpack.c.l.b16 %v213
  %v910 = vunpack.c.h.b16 %v213
  %v911 = vunpack.c.l.b16 %v214
  %v912 = vunpack.c.h.b16 %v214
  %v913 = vunpack.c.l.b16 %v215
  %v914 = vunpack.c.h.b16 %v215
  %v915 = vunpack.c.l.b16 %v216
  %v916 = vunpack.c.l.b16 %v217
  %v917 = vunpack.c.h.b16 %v217
  %v918 = vunpack.c.l.b16 %v218
  %v919 = vunpack.c.h.b16 %v218
  %v920 = vunpack.c.l.b16 %v219
  %v921 = vunpack.c.h.b16 %v219
  %v922 = vunpack.c.l.b16 %v220
  %v923 = vunpack.c.h.b16 %v220
  %v924 = vunpack.c.l.b16 %v221
  %v925 = vunpack.c.h.b16 %v221
  %v926 = vunpack.c.l.b16 %v222
  %v927 = vunpack.c.h.b16 %v222
  %v928 = vunpack.c.l.b16 %v223
  %v929 = vunpack.c.h.b16 %v223
  %v930 = vunpack.c.l.b16 %v224
  %v931 = vunpack.c.h.b16 %v224
  %v932 = vunpack.c.l.b16 %v225
  %v933 = vunpack.c.h.b16 %v225
  %v934 = vunpack.c.l.b16 %v226
  %v935 = vunpack.c.h.b16 %v226
  %v936 = vunpack.c.l.b16 %v227
  %v937 = vunpack.c.l.b16 %v228
  %v938 = vunpack.c.h.b16 %v228
  %v939 = vunpack.c.l.b16 %v229
  %v940 = vunpack.c.h.b16 %v229
  %v941 = vunpack.c.l.b16 %v230
  %v942 = vunpack.c.h.b16 %v230
  %v943 = vunpack.c.l.b16 %v231
  %v944 = vunpack.c.h.b16 %v231
  %v945 = vunpack.c.l.b16 %v232
  %v946 = vunpack.c.h.b16 %v232
  %v947 = vunpack.c.l.b16 %v233
  %v948 = vunpack.c.h.b16 %v233
  %v949 = vunpack.c.l.b16 %v234
  %v950 = vunpack.c.h.b16 %v234
  %v951 = vunpack.c.l.b16 %v235
  %v952 = vunpack.c.h.b16 %v235
  %v953 = vunpack.c.l.b16 %v236
  %v954 = vunpack.c.h.b16 %v236
  %v955 = vunpack.c.l.b16 %v237
  %v956 = vunpack.c.h.b16 %v237
  %v957 = vunpack.c.l.b16 %v238
  %v958 = vpack.c.b16 %v580, %v559
  %v959 = vpack.c.b16 %v581, %v560
  %v960 = vpack.c.b16 %v582, %v561
  %v961 = vpack.c.b16 %v583, %v562
  %v962 = vpack.c.b16 %v584, %v563
  %v963 = vpack.c.b16 %v585, %v564
  %v964 = vpack.c.b16 %v586, %v565
  %v965 = vpack.c.b16 %v587, %v566
  %v966 = vpack.c.b16 %v588, %v567
  %v967 = vpack.c.b16 %v589, %v568
  %v968 = vpack.c.b16 %v590, %v569
  %v969 = vpack.c.b16 %v591, %v570
  %v970 = vpack.c.b16 %v592, %v571
  %v971 = vpack.c.b16 %v593, %v572
  %v972 = vpack.c.b16 %v594, %v573
  %v973 = vpack.c.b16 %v595, %v574
  %v974 = vpack.c.b16 %v596, %v575
  %v975 = vpack.c.b16 %v597, %v576
  %v976 = vpack.c.b16 %v598, %v577
  %v977 = vpack.c.b16 %v599, %v578
  %v978 = vpack.c.b16 %v600, %v579
  %v979 = vpack.c.b16 %v622, %v601
  %v980 = vpack.c.b16 %v623, %v602
  %v981 = vpack.c.b16 %v624, %v603
  %v982 = vpack.c.b16 %v625, %v604
  %v983 = vpack.c.b16 %v626, %v605
  %v984 = vpack.c.b16 %v627, %v606
  %v985 = vpack.c.b16 %v628, %v607
  %v986 = vpack.c.b16 %v629, %v608
  %v987 = vpack.c.b16 %v630, %v609
  %v988 = vpack.c.b16 %v631, %v610
  %v989 = vpack.c.b16 %v632, %v611
  %v990 = vpack.c.b16 %v633, %v612
  %v991 = vpack.c.b16 %v634, %v613
  %v992 = vpack.c.b16 %v635, %v614
  %v993 = vpack.c.b16 %v636, %v615
  %v994 = vpack.c.b16 %v637, %v616
  %v995 = vpack.c.b16 %v638, %v617
  %v996 = vpack.c.b16 %v639, %v618
  %v997 = vpack.c.b16 %v640, %v619
  %v998 = vpack.c.b16 %v641, %v620
  %v999 = vpack.c.b16 %v642, %v621
  %v1000 = vpack.c.b16 %v664, %v643
  %v1001 = vpack.c.b16 %v665, %v644
  %v1002 = vpack.c.b16 %v666, %v645
  %v1003 = vpack.c.b16 %v667, %v646
  %v1004 = vpack.c.b16 %v668, %v647
  %v1005 = vpack.c.b16 %v669, %v648
  %v1006 = vpack.c.b16 %v670, %v649
  %v1007 = vpack.c.b16 %v671, %v650
  %v1008 = vpack.c.b16 %v672, %v651
  %v1009 = vpack.c.b16 %v673, %v652
  %v1010 = vpack.c.b16 %v674, %v653
  %v1011 = vpack.c.b16 %v675, %v654
  %v1012 = vpack.c.b16 %v676, %v655
  %v1013 = vpack.c.b16 %v677, %v656
  %v1014 = vpack.c.b16 %v678, %v657
  %v1015 = vpack.c.b16 %v679, %v658
  %v1016 = vpack.c.b16 %v680, %v659
  %v1017 = vpack.c.b16 %v681, %v660
  %v1018 = vpack.c.b16 %v682, %v661
  %v1019 = vpack.c.b16 %v683, %v662
  %v1020 = vpack.c.b16 %v684, %v663
  %v1021 = vpack.c.b16 %v706, %v685
  %v1022 = vpack.c.b16 %v707, %v686
  %v1023 = vpack.c.b16 %v708, %v687
  %v1024 = vpack.c.b16 %v709, %v688
  %v1025 = vpack.c.b16 %v710, %v689
  %v1026 = vpack.c.b16 %v711, %v690
  %v1027 = vpack.c.b16 %v712, %v691
  %v1028 = vpack.c.b16 %v713, %v692
  %v1029 = vpack.c.b16 %v714, %v693
  %v1030 = vpack.c.b16 %v715, %v694
  %v1031 = vpack.c.b16 %v716, %v695
  %v1032 = vpack.c.b16 %v717, %v696
  %v1033 = vpack.c.b16 %v718, %v697
  %v1034 = vpack.c.b16 %v719, %v698
  %v1035 = vpack.c.b16 %v720, %v699
  %v1036 = vpack.c.b16 %v721, %v700
  %v1037 = vpack.c.b16 %v722, %v701
  %v1038 = vpack.c.b16 %v723, %v702
  %v1039 = vpack.c.b16 %v724, %v703
  %v1040 = vpack.c.b16 %v725, %v704
  %v1041 = vpack.c.b16 %v726, %v705
  %v1042 = vpack.c.b16 %v748, %v727
  %v1043 = vpack.c.b16 %v749, %v728
  %v1044 = vpack.c.b16 %v750, %v729
  %v1045 = vpack.c.b16 %v751, %v730
  %v1046 = vpack.c.b16 %v752, %v731
  %v1047 = vpack.c.b16 %v753, %v732
  %v1048 = vpack.c.b16 %v754, %v733
  %v1049 = vpack.c.b16 %v755, %v734
  %v1050 = vpack.c.b16 %v756, %v735
  %v1051 = vpack.c.b16 %v757, %v736
  %v1052 = vpack.c.b16 %v758, %v737
  %v1053 = vpack.c.b16 %v759, %v738
  %v1054 = vpack.c.b16 %v760, %v739
  %v1055 = vpack.c.b16 %v761, %v740
  %v1056 = vpack.c.b16 %v762, %v741
  %v1057 = vpack.c.b16 %v763, %v742
  %v1058 = vpack.c.b16 %v764, %v743
  %v1059 = vpack.c.b16 %v765, %v744
  %v1060 = vpack.c.b16 %v766, %v745
  %v1061 = vpack.c.b16 %v767, %v746
  %v1062 = vpack.c.b16 %v768, %v747
  %v1063 = vpack.c.b16 %v790, %v769
  %v1064 = vpack.c.b16 %v791, %v770
  %v1065 = vpack.c.b16 %v792, %v771
  %v1066 = vpack.c.b16 %v793, %v772
  %v1067 = vpack.c.b16 %v794, %v773
  %v1068 = vpack.c.b16 %v795, %v774
  %v1069 = vpack.c.b16 %v796, %v775
  %v1070 = vpack.c.b16 %v797, %v776
  %v1071 = vpack.c.b16 %v798, %v777
  %v1072 = vpack.c.b16 %v799, %v778
  %v1073 = vpack.c.b16 %v800, %v779
  %v1074 = vpack.c.b16 %v801, %v780
  %v1075 = vpack.c.b16 %v802, %v781
  %v1076 = vpack.c.b16 %v803, %v782
  %v1077 = vpack.c.b16 %v804, %v783
  %v1078 = vpack.c.b16 %v805, %v784
  %v1079 = vpack.c.b16 %v806, %v785
  %v1080 = vpack.c.b16 %v807, %v786
  %v1081 = vpack.c.b16 %v808, %v787
  %v1082 = vpack.c.b16 %v809, %v788
  %v1083 = vpack.c.b16 %v810, %v789
  %v1084 = vpack.c.b16 %v832, %v811
  %v1085 = vpack.c.b16 %v833, %v812
  %v1086 = vpack.c.b16 %v834, %v813
  %v1087 = vpack.c.b16 %v835, %v814
  %v1088 = vpack.c.b16 %v836, %v815
  %v1089 = vpack.c.b16 %v837, %v816
  %v1090 = vpack.c.b16 %v838, %v817
  %v1091 = vpack.c.b16 %v839, %v818
  %v1092 = vpack.c.b16 %v840, %v819
  %v1093 = vpack.c.b16 %v841, %v820
  %v1094 = vpack.c.b16 %v842, %v821
  %v1095 = vpack.c.b16 %v843, %v822
  %v1096 = vpack.c.b16 %v844, %v823
  %v1097 = vpack.c.b16 %v845, %v824
  %v1098 = vpack.c.b16 %v846, %v825
  %v1099 = vpack.c.b16 %v847, %v826
  %v1100 = vpack.c.b16 %v848, %v827
  %v1101 = vpack.c.b16 %v849, %v828
  %v1102 = vpack.c.b16 %v850, %v829
  %v1103 = vpack.c.b16 %v851, %v830
  %v1104 = vpack.c.b16 %v852, %v831
  %v1105 = vpack.c.b16 %v874, %v853
  %v1106 = vpack.c.b16 %v875, %v854
  %v1107 = vpack.c.b16 %v876, %v855
  %v1108 = vpack.c.b16 %v877, %v856
  %v1109 = vpack.c.b16 %v878, %v857
  %v1110 = vpack.c.b16 %v879, %v858
  %v1111 = vpack.c.b16 %v880, %v859
  %v1112 = vpack.c.b16 %v881, %v860
  %v1113 = vpack.c.b16 %v882, %v861
  %v1114 = vpack.c.b16 %v883, %v862
  %v1115 = vpack.c.b16 %v884, %v863
  %v1116 = vpack.c.b16 %v885, %v864
  %v1117 = vpack.c.b16 %v886, %v865
  %v1118 = vpack.c.b16 %v887, %v866
  %v1119 = vpack.c.b16 %v888, %v867
  %v1120 = vpack.c.b16 %v889, %v868
  %v1121 = vpack.c.b16 %v890, %v869
  %v1122 = vpack.c.b16 %v891, %v870
  %v1123 = vpack.c.b16 %v892, %v871
  %v1124 = vpack.c.b16 %v893, %v872
  %v1125 = vpack.c.b16 %v894, %v873
  %v1126 = vpack.c.b16 %v916, %v895
  %v1127 = vpack.c.b16 %v917, %v896
  %v1128 = vpack.c.b16 %v918, %v897
  %v1129 = vpack.c.b16 %v919, %v898
  %v1130 = vpack.c.b16 %v920, %v899
  %v1131 = vpack.c.b16 %v921, %v900
  %v1132 = vpack.c.b16 %v922, %v901
  %v1133 = vpack.c.b16 %v923, %v902
  %v1134 = vpack.c.b16 %v924, %v903
  %v1135 = vpack.c.b16 %v925, %v904
  %v1136 = vpack.c.b16 %v926, %v905
  %v1137 = vpack.c.b16 %v927, %v906
  %v1138 = vpack.c.b16 %v928, %v907
  %v1139 = vpack.c.b16 %v929, %v908
  %v1140 = vpack.c.b16 %v930, %v909
  %v1141 = vpack.c.b16 %v931, %v910
  %v1142 = vpack.c.b16 %v932, %v911
  %v1143 = vpack.c.b16 %v933, %v912
  %v1144 = vpack.c.b16 %v934, %v913
  %v1145 = vpack.c.b16 %v935, %v914
  %v1146 = vpack.c.b16 %v936, %v915
  %v1147 = vpack.c.b16 %v937, %v937
  %v1148 = vpack.c.b16 %v938, %v938
  %v1149 = vpack.c.b16 %v939, %v939
  %v1150 = vpack.c.b16 %v940, %v940
  %v1151 = vpack.c.b16 %v941, %v941
  %v1152 = vpack.c.b16 %v942, %v942
  %v1153 = vpack.c.b16 %v943, %v943
  %v1154 = vpack.c.b16 %v944, %v944
  %v1155 = vpack.c.b16 %v945, %v945
  %v1156 = vpack.c.b16 %v946, %v946
  %v1157 = vpack.c.b16 %v947, %v947
  %v1158 = vpack.c.b16 %v948, %v948
  %v1159 = vpack.c.b16 %v949, %v949
  %v1160 = vpack.c.b16 %v950, %v950
  %v1161 = vpack.c.b16 %v951, %v951
  %v1162 = vpack.c.b16 %v952, %v952
  %v1163 = vpack.c.b16 %v953, %v953
  %v1164 = vpack.c.b16 %v954, %v954
  %v1165 = vpack.c.b16 %v955, %v955
  %v1166 = vpack.c.b16 %v956, %v956
  %v1167 = vpack.c.b16 %v957, %v957
  %vm1357 = vcmask 138240
  %v1359 = vsel %vm1357, %v29, 0
  %vm1361 = vcmask 1040384
  %v1362 = vsel 0, 4294967295, 65535
  %v1363 = vsel %vm1361, %v1362, 0
  %v1365 = vand.u32 %v1147, %v1363
  %v1368 = vand.u32 %v1148, %v1363
  %v1371 = vand.u32 %v1149, %v1363
  %v1374 = vand.u32 %v1150, %v1363
  %v1377 = vand.u32 %v1151, %v1363
  %v1380 = vand.u32 %v1152, %v1363
  %v1383 = vand.u32 %v1153, %v1363
  %v1386 = vand.u32 %v1154, %v1363
  %v1389 = vand.u32 %v1155, %v1363
  %v1392 = vand.u32 %v1156, %v1363
  %v1395 = vand.u32 %v1157, %v1363
  %v1398 = vand.u32 %v1158, %v1363
  %v1401 = vand.u32 %v1159, %v1363
  %v1404 = vand.u32 %v1160, %v1363
  %v1407 = vand.u32 %v1161, %v1363
  %v1410 = vand.u32 %v1162, %v1363
  %v1413 = vand.u32 %v1163, %v1363
  %v1416 = vand.u32 %v1164, %v1363
  %v1419 = vand.u32 %v1165, %v1363
  %v1422 = vand.u32 %v1166, %v1363
  %v1425 = vand.u32 %v1167, %v1363
  %1427 = vmatprep.subr.bf16.mxu0 %v959
  %1428 = vmatpush1.bf16.msra.mxu0 %v958
  %1429 = vmatprep.subr.bf16.mxu0 %v980
  %1430 = vmatpush1.bf16.msra.mxu0 %v979
  %1431 = vmatprep.subr.bf16.mxu0 %v1001
  %1432 = vmatpush1.bf16.msra.mxu0 %v1000
  %1433 = vmatprep.subr.bf16.mxu0 %v1022
  %1434 = vmatpush1.bf16.msra.mxu0 %v1021
  %1435 = vmatprep.subr.bf16.mxu0 %v1043
  %1436 = vmatpush1.bf16.msra.mxu0 %v1042
  %1437 = vmatprep.subr.bf16.mxu0 %v1064
  %1438 = vmatpush1.bf16.msra.mxu0 %v1063
  %1439 = vmatprep.subr.bf16.mxu0 %v1085
  %1440 = vmatpush1.bf16.msra.mxu0 %v1084
  %1441 = vmatprep.subr.bf16.mxu0 %v1106
  %1442 = vmatpush1.bf16.msra.mxu0 %v1105
  %1443 = vmatprep.subr.bf16.mxu0 %v1127
  %1444 = vmatpush1.bf16.msra.mxu0 %v1126
  %1445 = vmatprep.subr.bf16.mxu0 %v1368
  %1446 = vmatpush1.bf16.msra.mxu0 %v1365
  %1447 = vmatprep.subr.bf16.mxu0 0
  %1448 = vmatpush1.bf16.msra.mxu0 0
  %1449 = vmatprep.subr.bf16.mxu0 0
  %1450 = vmatpush1.bf16.msra.mxu0 0
  %1451 = vmatprep.subr.bf16.mxu0 0
  %1452 = vmatpush1.bf16.msra.mxu0 0
  %1453 = vmatprep.subr.bf16.mxu0 0
  %1454 = vmatpush1.bf16.msra.mxu0 0
  %1455 = vmatprep.subr.bf16.mxu0 0
  %1456 = vmatpush1.bf16.msra.mxu0 0
  %1457 = vmatprep.subr.bf16.mxu0 0
  %1458 = vmatpush1.bf16.msra.mxu0 0
  %1459 = vmatprep.mubr.bf16.mxu0 %v1359
  %1460 = vmatmul.mubr.bf16.gmra.mrb[0].mxu0 %v28
  %v1461 = vpop.f32.mrb[0].mxu0
  %v1462 = vadd.f32 %v248, %v1461
  %v1463 = vpop.f32.mrb[0].mxu0
  %v1464 = vadd.f32 %v252, %v1463
  %v1465 = vpop.f32.mrb[0].mxu0
  %v1466 = vpop.f32.mrb[0].mxu0
  %1467 = vdwg.mxu0
  %1468 = vmatprep.subr.bf16.mxu0 %v961
  %1469 = vmatpush1.bf16.msra.mxu0 %v960
  %1470 = vmatprep.subr.bf16.mxu0 %v982
  %1471 = vmatpush1.bf16.msra.mxu0 %v981
  %1472 = vmatprep.subr.bf16.mxu0 %v1003
  %1473 = vmatpush1.bf16.msra.mxu0 %v1002
  %1474 = vmatprep.subr.bf16.mxu0 %v1024
  %1475 = vmatpush1.bf16.msra.mxu0 %v1023
  %1476 = vmatprep.subr.bf16.mxu0 %v1045
  %1477 = vmatpush1.bf16.msra.mxu0 %v1044
  %1478 = vmatprep.subr.bf16.mxu0 %v1066
  %1479 = vmatpush1.bf16.msra.mxu0 %v1065
  %1480 = vmatprep.subr.bf16.mxu0 %v1087
  %1481 = vmatpush1.bf16.msra.mxu0 %v1086
  %1482 = vmatprep.subr.bf16.mxu0 %v1108
  %1483 = vmatpush1.bf16.msra.mxu0 %v1107
  %1484 = vmatprep.subr.bf16.mxu0 %v1129
  %1485 = vmatpush1.bf16.msra.mxu0 %v1128
  %1486 = vmatprep.subr.bf16.mxu0 %v1374
  %1487 = vmatpush1.bf16.msra.mxu0 %v1371
  %1488 = vmatprep.subr.bf16.mxu0 0
  %1489 = vmatpush1.bf16.msra.mxu0 0
  %1490 = vmatprep.subr.bf16.mxu0 0
  %1491 = vmatpush1.bf16.msra.mxu0 0
  %1492 = vmatprep.subr.bf16.mxu0 0
  %1493 = vmatpush1.bf16.msra.mxu0 0
  %1494 = vmatprep.subr.bf16.mxu0 0
  %1495 = vmatpush1.bf16.msra.mxu0 0
  %1496 = vmatprep.subr.bf16.mxu0 0
  %1497 = vmatpush1.bf16.msra.mxu0 0
  %1498 = vmatprep.subr.bf16.mxu0 0
  %1499 = vmatpush1.bf16.msra.mxu0 0
  %1500 = vmatprep.mubr.bf16.mxu0 %v1359
  %1501 = vmatmul.mubr.bf16.gmra.mrb[0].mxu0 %v28
  %v1502 = vpop.f32.mrb[0].mxu0
  %v1503 = vadd.f32 %v256, %v1502
  %v1504 = vpop.f32.mrb[0].mxu0
  %v1505 = vadd.f32 %v260, %v1504
  %v1506 = vpop.f32.mrb[0].mxu0
  %v1507 = vpop.f32.mrb[0].mxu0
  %1508 = vdwg.mxu0
  %1509 = vmatprep.subr.bf16.mxu0 %v963
  %1510 = vmatpush1.bf16.msra.mxu0 %v962
  %1511 = vmatprep.subr.bf16.mxu0 %v984
  %1512 = vmatpush1.bf16.msra.mxu0 %v983
  %1513 = vmatprep.subr.bf16.mxu0 %v1005
  %1514 = vmatpush1.bf16.msra.mxu0 %v1004
  %1515 = vmatprep.subr.bf16.mxu0 %v1026
  %1516 = vmatpush1.bf16.msra.mxu0 %v1025
  %1517 = vmatprep.subr.bf16.mxu0 %v1047
  %1518 = vmatpush1.bf16.msra.mxu0 %v1046
  %1519 = vmatprep.subr.bf16.mxu0 %v1068
  %1520 = vmatpush1.bf16.msra.mxu0 %v1067
  %1521 = vmatprep.subr.bf16.mxu0 %v1089
  %1522 = vmatpush1.bf16.msra.mxu0 %v1088
  %1523 = vmatprep.subr.bf16.mxu0 %v1110
  %1524 = vmatpush1.bf16.msra.mxu0 %v1109
  %1525 = vmatprep.subr.bf16.mxu0 %v1131
  %1526 = vmatpush1.bf16.msra.mxu0 %v1130
  %1527 = vmatprep.subr.bf16.mxu0 %v1380
  %1528 = vmatpush1.bf16.msra.mxu0 %v1377
  %1529 = vmatprep.subr.bf16.mxu0 0
  %1530 = vmatpush1.bf16.msra.mxu0 0
  %1531 = vmatprep.subr.bf16.mxu0 0
  %1532 = vmatpush1.bf16.msra.mxu0 0
  %1533 = vmatprep.subr.bf16.mxu0 0
  %1534 = vmatpush1.bf16.msra.mxu0 0
  %1535 = vmatprep.subr.bf16.mxu0 0
  %1536 = vmatpush1.bf16.msra.mxu0 0
  %1537 = vmatprep.subr.bf16.mxu0 0
  %1538 = vmatpush1.bf16.msra.mxu0 0
  %1539 = vmatprep.subr.bf16.mxu0 0
  %1540 = vmatpush1.bf16.msra.mxu0 0
  %1541 = vmatprep.mubr.bf16.mxu0 %v1359
  %1542 = vmatmul.mubr.bf16.gmra.mrb[0].mxu0 %v28
  %v1543 = vpop.f32.mrb[0].mxu0
  %v1544 = vadd.f32 %v264, %v1543
  %v1545 = vpop.f32.mrb[0].mxu0
  %v1546 = vadd.f32 %v268, %v1545
  %v1547 = vpop.f32.mrb[0].mxu0
  %v1548 = vpop.f32.mrb[0].mxu0
  %1549 = vdwg.mxu0
  %1550 = vmatprep.subr.bf16.mxu0 %v965
  %1551 = vmatpush1.bf16.msra.mxu0 %v964
  %1552 = vmatprep.subr.bf16.mxu0 %v986
  %1553 = vmatpush1.bf16.msra.mxu0 %v985
  %1554 = vmatprep.subr.bf16.mxu0 %v1007
  %1555 = vmatpush1.bf16.msra.mxu0 %v1006
  %1556 = vmatprep.subr.bf16.mxu0 %v1028
  %1557 = vmatpush1.bf16.msra.mxu0 %v1027
  %1558 = vmatprep.subr.bf16.mxu0 %v1049
  %1559 = vmatpush1.bf16.msra.mxu0 %v1048
  %1560 = vmatprep.subr.bf16.mxu0 %v1070
  %1561 = vmatpush1.bf16.msra.mxu0 %v1069
  %1562 = vmatprep.subr.bf16.mxu0 %v1091
  %1563 = vmatpush1.bf16.msra.mxu0 %v1090
  %1564 = vmatprep.subr.bf16.mxu0 %v1112
  %1565 = vmatpush1.bf16.msra.mxu0 %v1111
  %1566 = vmatprep.subr.bf16.mxu0 %v1133
  %1567 = vmatpush1.bf16.msra.mxu0 %v1132
  %1568 = vmatprep.subr.bf16.mxu0 %v1386
  %1569 = vmatpush1.bf16.msra.mxu0 %v1383
  %1570 = vmatprep.subr.bf16.mxu0 0
  %1571 = vmatpush1.bf16.msra.mxu0 0
  %1572 = vmatprep.subr.bf16.mxu0 0
  %1573 = vmatpush1.bf16.msra.mxu0 0
  %1574 = vmatprep.subr.bf16.mxu0 0
  %1575 = vmatpush1.bf16.msra.mxu0 0
  %1576 = vmatprep.subr.bf16.mxu0 0
  %1577 = vmatpush1.bf16.msra.mxu0 0
  %1578 = vmatprep.subr.bf16.mxu0 0
  %1579 = vmatpush1.bf16.msra.mxu0 0
  %1580 = vmatprep.subr.bf16.mxu0 0
  %1581 = vmatpush1.bf16.msra.mxu0 0
  %1582 = vmatprep.mubr.bf16.mxu0 %v1359
  %1583 = vmatmul.mubr.bf16.gmra.mrb[0].mxu0 %v28
  %v1584 = vpop.f32.mrb[0].mxu0
  %v1585 = vadd.f32 %v272, %v1584
  %v1586 = vpop.f32.mrb[0].mxu0
  %v1587 = vadd.f32 %v276, %v1586
  %v1588 = vpop.f32.mrb[0].mxu0
  %v1589 = vpop.f32.mrb[0].mxu0
  %1590 = vdwg.mxu0
  %1591 = vmatprep.subr.bf16.mxu0 %v967
  %1592 = vmatpush1.bf16.msra.mxu0 %v966
  %1593 = vmatprep.subr.bf16.mxu0 %v988
  %1594 = vmatpush1.bf16.msra.mxu0 %v987
  %1595 = vmatprep.subr.bf16.mxu0 %v1009
  %1596 = vmatpush1.bf16.msra.mxu0 %v1008
  %1597 = vmatprep.subr.bf16.mxu0 %v1030
  %1598 = vmatpush1.bf16.msra.mxu0 %v1029
  %1599 = vmatprep.subr.bf16.mxu0 %v1051
  %1600 = vmatpush1.bf16.msra.mxu0 %v1050
  %1601 = vmatprep.subr.bf16.mxu0 %v1072
  %1602 = vmatpush1.bf16.msra.mxu0 %v1071
  %1603 = vmatprep.subr.bf16.mxu0 %v1093
  %1604 = vmatpush1.bf16.msra.mxu0 %v1092
  %1605 = vmatprep.subr.bf16.mxu0 %v1114
  %1606 = vmatpush1.bf16.msra.mxu0 %v1113
  %1607 = vmatprep.subr.bf16.mxu0 %v1135
  %1608 = vmatpush1.bf16.msra.mxu0 %v1134
  %1609 = vmatprep.subr.bf16.mxu0 %v1392
  %1610 = vmatpush1.bf16.msra.mxu0 %v1389
  %1611 = vmatprep.subr.bf16.mxu0 0
  %1612 = vmatpush1.bf16.msra.mxu0 0
  %1613 = vmatprep.subr.bf16.mxu0 0
  %1614 = vmatpush1.bf16.msra.mxu0 0
  %1615 = vmatprep.subr.bf16.mxu0 0
  %1616 = vmatpush1.bf16.msra.mxu0 0
  %1617 = vmatprep.subr.bf16.mxu0 0
  %1618 = vmatpush1.bf16.msra.mxu0 0
  %1619 = vmatprep.subr.bf16.mxu0 0
  %1620 = vmatpush1.bf16.msra.mxu0 0
  %1621 = vmatprep.subr.bf16.mxu0 0
  %1622 = vmatpush1.bf16.msra.mxu0 0
  %1623 = vmatprep.mubr.bf16.mxu0 %v1359
  %1624 = vmatmul.mubr.bf16.gmra.mrb[0].mxu0 %v28
  %v1625 = vpop.f32.mrb[0].mxu0
  %v1626 = vadd.f32 %v280, %v1625
  %v1627 = vpop.f32.mrb[0].mxu0
  %v1628 = vadd.f32 %v284, %v1627
  %v1629 = vpop.f32.mrb[0].mxu0
  %v1630 = vpop.f32.mrb[0].mxu0
  %1631 = vdwg.mxu0
  %1632 = vmatprep.subr.bf16.mxu0 %v969
  %1633 = vmatpush1.bf16.msra.mxu0 %v968
  %1634 = vmatprep.subr.bf16.mxu0 %v990
  %1635 = vmatpush1.bf16.msra.mxu0 %v989
  %1636 = vmatprep.subr.bf16.mxu0 %v1011
  %1637 = vmatpush1.bf16.msra.mxu0 %v1010
  %1638 = vmatprep.subr.bf16.mxu0 %v1032
  %1639 = vmatpush1.bf16.msra.mxu0 %v1031
  %1640 = vmatprep.subr.bf16.mxu0 %v1053
  %1641 = vmatpush1.bf16.msra.mxu0 %v1052
  %1642 = vmatprep.subr.bf16.mxu0 %v1074
  %1643 = vmatpush1.bf16.msra.mxu0 %v1073
  %1644 = vmatprep.subr.bf16.mxu0 %v1095
  %1645 = vmatpush1.bf16.msra.mxu0 %v1094
  %1646 = vmatprep.subr.bf16.mxu0 %v1116
  %1647 = vmatpush1.bf16.msra.mxu0 %v1115
  %1648 = vmatprep.subr.bf16.mxu0 %v1137
  %1649 = vmatpush1.bf16.msra.mxu0 %v1136
  %1650 = vmatprep.subr.bf16.mxu0 %v1398
  %1651 = vmatpush1.bf16.msra.mxu0 %v1395
  %1652 = vmatprep.subr.bf16.mxu0 0
  %1653 = vmatpush1.bf16.msra.mxu0 0
  %1654 = vmatprep.subr.bf16.mxu0 0
  %1655 = vmatpush1.bf16.msra.mxu0 0
  %1656 = vmatprep.subr.bf16.mxu0 0
  %1657 = vmatpush1.bf16.msra.mxu0 0
  %1658 = vmatprep.subr.bf16.mxu0 0
  %1659 = vmatpush1.bf16.msra.mxu0 0
  %1660 = vmatprep.subr.bf16.mxu0 0
  %1661 = vmatpush1.bf16.msra.mxu0 0
  %1662 = vmatprep.subr.bf16.mxu0 0
  %1663 = vmatpush1.bf16.msra.mxu0 0
  %1664 = vmatprep.mubr.bf16.mxu0 %v1359
  %1665 = vmatmul.mubr.bf16.gmra.mrb[0].mxu0 %v28
  %v1666 = vpop.f32.mrb[0].mxu0
  %v1667 = vadd.f32 %v288, %v1666
  %v1668 = vpop.f32.mrb[0].mxu0
  %v1669 = vadd.f32 %v292, %v1668
  %v1670 = vpop.f32.mrb[0].mxu0
  %v1671 = vpop.f32.mrb[0].mxu0
  %1672 = vdwg.mxu0
  %1673 = vmatprep.subr.bf16.mxu0 %v971
  %1674 = vmatpush1.bf16.msra.mxu0 %v970
  %1675 = vmatprep.subr.bf16.mxu0 %v992
  %1676 = vmatpush1.bf16.msra.mxu0 %v991
  %1677 = vmatprep.subr.bf16.mxu0 %v1013
  %1678 = vmatpush1.bf16.msra.mxu0 %v1012
  %1679 = vmatprep.subr.bf16.mxu0 %v1034
  %1680 = vmatpush1.bf16.msra.mxu0 %v1033
  %1681 = vmatprep.subr.bf16.mxu0 %v1055
  %1682 = vmatpush1.bf16.msra.mxu0 %v1054
  %1683 = vmatprep.subr.bf16.mxu0 %v1076
  %1684 = vmatpush1.bf16.msra.mxu0 %v1075
  %1685 = vmatprep.subr.bf16.mxu0 %v1097
  %1686 = vmatpush1.bf16.msra.mxu0 %v1096
  %1687 = vmatprep.subr.bf16.mxu0 %v1118
  %1688 = vmatpush1.bf16.msra.mxu0 %v1117
  %1689 = vmatprep.subr.bf16.mxu0 %v1139
  %1690 = vmatpush1.bf16.msra.mxu0 %v1138
  %1691 = vmatprep.subr.bf16.mxu0 %v1404
  %1692 = vmatpush1.bf16.msra.mxu0 %v1401
  %1693 = vmatprep.subr.bf16.mxu0 0
  %1694 = vmatpush1.bf16.msra.mxu0 0
  %1695 = vmatprep.subr.bf16.mxu0 0
  %1696 = vmatpush1.bf16.msra.mxu0 0
  %1697 = vmatprep.subr.bf16.mxu0 0
  %1698 = vmatpush1.bf16.msra.mxu0 0
  %1699 = vmatprep.subr.bf16.mxu0 0
  %1700 = vmatpush1.bf16.msra.mxu0 0
  %1701 = vmatprep.subr.bf16.mxu0 0
  %1702 = vmatpush1.bf16.msra.mxu0 0
  %1703 = vmatprep.subr.bf16.mxu0 0
  %1704 = vmatpush1.bf16.msra.mxu0 0
  %1705 = vmatprep.mubr.bf16.mxu0 %v1359
  %1706 = vmatmul.mubr.bf16.gmra.mrb[0].mxu0 %v28
  %v1707 = vpop.f32.mrb[0].mxu0
  %v1708 = vadd.f32 %v296, %v1707
  %v1709 = vpop.f32.mrb[0].mxu0
  %v1710 = vadd.f32 %v300, %v1709
  %v1711 = vpop.f32.mrb[0].mxu0
  %v1712 = vpop.f32.mrb[0].mxu0
  %1713 = vdwg.mxu0
  %1714 = vmatprep.subr.bf16.mxu0 %v973
  %1715 = vmatpush1.bf16.msra.mxu0 %v972
  %1716 = vmatprep.subr.bf16.mxu0 %v994
  %1717 = vmatpush1.bf16.msra.mxu0 %v993
  %1718 = vmatprep.subr.bf16.mxu0 %v1015
  %1719 = vmatpush1.bf16.msra.mxu0 %v1014
  %1720 = vmatprep.subr.bf16.mxu0 %v1036
  %1721 = vmatpush1.bf16.msra.mxu0 %v1035
  %1722 = vmatprep.subr.bf16.mxu0 %v1057
  %1723 = vmatpush1.bf16.msra.mxu0 %v1056
  %1724 = vmatprep.subr.bf16.mxu0 %v1078
  %1725 = vmatpush1.bf16.msra.mxu0 %v1077
  %1726 = vmatprep.subr.bf16.mxu0 %v1099
  %1727 = vmatpush1.bf16.msra.mxu0 %v1098
  %1728 = vmatprep.subr.bf16.mxu0 %v1120
  %1729 = vmatpush1.bf16.msra.mxu0 %v1119
  %1730 = vmatprep.subr.bf16.mxu0 %v1141
  %1731 = vmatpush1.bf16.msra.mxu0 %v1140
  %1732 = vmatprep.subr.bf16.mxu0 %v1410
  %1733 = vmatpush1.bf16.msra.mxu0 %v1407
  %1734 = vmatprep.subr.bf16.mxu0 0
  %1735 = vmatpush1.bf16.msra.mxu0 0
  %1736 = vmatprep.subr.bf16.mxu0 0
  %1737 = vmatpush1.bf16.msra.mxu0 0
  %1738 = vmatprep.subr.bf16.mxu0 0
  %1739 = vmatpush1.bf16.msra.mxu0 0
  %1740 = vmatprep.subr.bf16.mxu0 0
  %1741 = vmatpush1.bf16.msra.mxu0 0
  %1742 = vmatprep.subr.bf16.mxu0 0
  %1743 = vmatpush1.bf16.msra.mxu0 0
  %1744 = vmatprep.subr.bf16.mxu0 0
  %1745 = vmatpush1.bf16.msra.mxu0 0
  %1746 = vmatprep.mubr.bf16.mxu0 %v1359
  %1747 = vmatmul.mubr.bf16.gmra.mrb[0].mxu0 %v28
  %v1748 = vpop.f32.mrb[0].mxu0
  %v1749 = vadd.f32 %v304, %v1748
  %v1750 = vpop.f32.mrb[0].mxu0
  %v1751 = vadd.f32 %v308, %v1750
  %v1752 = vpop.f32.mrb[0].mxu0
  %v1753 = vpop.f32.mrb[0].mxu0
  %1754 = vdwg.mxu0
  %1755 = vmatprep.subr.bf16.mxu0 %v975
  %1756 = vmatpush1.bf16.msra.mxu0 %v974
  %1757 = vmatprep.subr.bf16.mxu0 %v996
  %1758 = vmatpush1.bf16.msra.mxu0 %v995
  %1759 = vmatprep.subr.bf16.mxu0 %v1017
  %1760 = vmatpush1.bf16.msra.mxu0 %v1016
  %1761 = vmatprep.subr.bf16.mxu0 %v1038
  %1762 = vmatpush1.bf16.msra.mxu0 %v1037
  %1763 = vmatprep.subr.bf16.mxu0 %v1059
  %1764 = vmatpush1.bf16.msra.mxu0 %v1058
  %1765 = vmatprep.subr.bf16.mxu0 %v1080
  %1766 = vmatpush1.bf16.msra.mxu0 %v1079
  %1767 = vmatprep.subr.bf16.mxu0 %v1101
  %1768 = vmatpush1.bf16.msra.mxu0 %v1100
  %1769 = vmatprep.subr.bf16.mxu0 %v1122
  %1770 = vmatpush1.bf16.msra.mxu0 %v1121
  %1771 = vmatprep.subr.bf16.mxu0 %v1143
  %1772 = vmatpush1.bf16.msra.mxu0 %v1142
  %1773 = vmatprep.subr.bf16.mxu0 %v1416
  %1774 = vmatpush1.bf16.msra.mxu0 %v1413
  %1775 = vmatprep.subr.bf16.mxu0 0
  %1776 = vmatpush1.bf16.msra.mxu0 0
  %1777 = vmatprep.subr.bf16.mxu0 0
  %1778 = vmatpush1.bf16.msra.mxu0 0
  %1779 = vmatprep.subr.bf16.mxu0 0
  %1780 = vmatpush1.bf16.msra.mxu0 0
  %1781 = vmatprep.subr.bf16.mxu0 0
  %1782 = vmatpush1.bf16.msra.mxu0 0
  %1783 = vmatprep.subr.bf16.mxu0 0
  %1784 = vmatpush1.bf16.msra.mxu0 0
  %1785 = vmatprep.subr.bf16.mxu0 0
  %1786 = vmatpush1.bf16.msra.mxu0 0
  %1787 = vmatprep.mubr.bf16.mxu0 %v1359
  %1788 = vmatmul.mubr.bf16.gmra.mrb[0].mxu0 %v28
  %v1789 = vpop.f32.mrb[0].mxu0
  %v1790 = vadd.f32 %v312, %v1789
  %v1791 = vpop.f32.mrb[0].mxu0
  %v1792 = vadd.f32 %v316, %v1791
  %v1793 = vpop.f32.mrb[0].mxu0
  %v1794 = vpop.f32.mrb[0].mxu0
  %1795 = vdwg.mxu0
  %1796 = vmatprep.subr.bf16.mxu0 %v977
  %1797 = vmatpush1.bf16.msra.mxu0 %v976
  %1798 = vmatprep.subr.bf16.mxu0 %v998
  %1799 = vmatpush1.bf16.msra.mxu0 %v997
  %1800 = vmatprep.subr.bf16.mxu0 %v1019
  %1801 = vmatpush1.bf16.msra.mxu0 %v1018
  %1802 = vmatprep.subr.bf16.mxu0 %v1040
  %1803 = vmatpush1.bf16.msra.mxu0 %v1039
  %1804 = vmatprep.subr.bf16.mxu0 %v1061
  %1805 = vmatpush1.bf16.msra.mxu0 %v1060
  %1806 = vmatprep.subr.bf16.mxu0 %v1082
  %1807 = vmatpush1.bf16.msra.mxu0 %v1081
  %1808 = vmatprep.subr.bf16.mxu0 %v1103
  %1809 = vmatpush1.bf16.msra.mxu0 %v1102
  %1810 = vmatprep.subr.bf16.mxu0 %v1124
  %1811 = vmatpush1.bf16.msra.mxu0 %v1123
  %1812 = vmatprep.subr.bf16.mxu0 %v1145
  %1813 = vmatpush1.bf16.msra.mxu0 %v1144
  %1814 = vmatprep.subr.bf16.mxu0 %v1422
  %1815 = vmatpush1.bf16.msra.mxu0 %v1419
  %1816 = vmatprep.subr.bf16.mxu0 0
  %1817 = vmatpush1.bf16.msra.mxu0 0
  %1818 = vmatprep.subr.bf16.mxu0 0
  %1819 = vmatpush1.bf16.msra.mxu0 0
  %1820 = vmatprep.subr.bf16.mxu0 0
  %1821 = vmatpush1.bf16.msra.mxu0 0
  %1822 = vmatprep.subr.bf16.mxu0 0
  %1823 = vmatpush1.bf16.msra.mxu0 0
  %1824 = vmatprep.subr.bf16.mxu0 0
  %1825 = vmatpush1.bf16.msra.mxu0 0
  %1826 = vmatprep.subr.bf16.mxu0 0
  %1827 = vmatpush1.bf16.msra.mxu0 0
  %1828 = vmatprep.mubr.bf16.mxu0 %v1359
  %1829 = vmatmul.mubr.bf16.gmra.mrb[0].mxu0 %v28
  %v1830 = vpop.f32.mrb[0].mxu0
  %v1831 = vadd.f32 %v320, %v1830
  %v1832 = vpop.f32.mrb[0].mxu0
  %v1833 = vadd.f32 %v324, %v1832
  %v1834 = vpop.f32.mrb[0].mxu0
  %v1835 = vpop.f32.mrb[0].mxu0
  %1836 = vdwg.mxu0
  %1837 = vmatprep.subr.bf16.mxu0 0
  %1838 = vmatpush1.bf16.msra.mxu0 %v978
  %1839 = vmatprep.subr.bf16.mxu0 0
  %1840 = vmatpush1.bf16.msra.mxu0 %v999
  %1841 = vmatprep.subr.bf16.mxu0 0
  %1842 = vmatpush1.bf16.msra.mxu0 %v1020
  %1843 = vmatprep.subr.bf16.mxu0 0
  %1844 = vmatpush1.bf16.msra.mxu0 %v1041
  %1845 = vmatprep.subr.bf16.mxu0 0
  %1846 = vmatpush1.bf16.msra.mxu0 %v1062
  %1847 = vmatprep.subr.bf16.mxu0 0
  %1848 = vmatpush1.bf16.msra.mxu0 %v1083
  %1849 = vmatprep.subr.bf16.mxu0 0
  %1850 = vmatpush1.bf16.msra.mxu0 %v1104
  %1851 = vmatprep.subr.bf16.mxu0 0
  %1852 = vmatpush1.bf16.msra.mxu0 %v1125
  %1853 = vmatprep.subr.bf16.mxu0 0
  %1854 = vmatpush1.bf16.msra.mxu0 %v1146
  %1855 = vmatprep.subr.bf16.mxu0 0
  %1856 = vmatpush1.bf16.msra.mxu0 %v1425
  %1857 = vmatprep.subr.bf16.mxu0 0
  %1858 = vmatpush1.bf16.msra.mxu0 0
  %1859 = vmatprep.subr.bf16.mxu0 0
  %1860 = vmatpush1.bf16.msra.mxu0 0
  %1861 = vmatprep.subr.bf16.mxu0 0
  %1862 = vmatpush1.bf16.msra.mxu0 0
  %1863 = vmatprep.subr.bf16.mxu0 0
  %1864 = vmatpush1.bf16.msra.mxu0 0
  %1865 = vmatprep.subr.bf16.mxu0 0
  %1866 = vmatpush1.bf16.msra.mxu0 0
  %1867 = vmatprep.subr.bf16.mxu0 0
  %1868 = vmatpush1.bf16.msra.mxu0 0
  %1869 = vmatprep.mubr.bf16.mxu0 %v1359
  %1870 = vmatmul.mubr.bf16.gmra.mrb[0].mxu0 %v28
  %v1871 = vpop.f32.mrb[0].mxu0
  %v1872 = vadd.f32 %v328, %v1871
  %v1873 = vpop.f32.mrb[0].mxu0
  %v1874 = vpop.f32.mrb[0].mxu0
  %v1875 = vpop.f32.mrb[0].mxu0
  %1876 = vdwg.mxu0
  %v1877 = vld [vmem:[%s1] sm:$0xff]
  %v1878 = vld [vmem:[%s1 + $0x8] sm:$0xff]
  %v1879 = vld [vmem:[%s1 + $0x10] sm:$0xff]
  %v1880 = vld [vmem:[%s1 + $0x18] sm:$0xff]
  %v1881 = vld [vmem:[%s1 + $0x20] sm:$0xff]
  %v1882 = vld [vmem:[%s1 + $0x28] sm:$0xff]
  %v1883 = vld [vmem:[%s1 + $0x30] sm:$0xff]
  %v1884 = vld [vmem:[%s1 + $0x38] sm:$0xff]
  %v1885 = vld [vmem:[%s1 + $0x40] sm:$0xff]
  %v1886 = vld [vmem:[%s1 + $0x48] sm:$0xff]
  %v1887 = vld [vmem:[%s1 + $0x50] sm:$0xff]
  %v1888 = vld [vmem:[%s1 + $0x58] sm:$0xff]
  %v1889 = vpack.c.bf16 %v1878, %v1877
  %v1890 = vpack.c.bf16 %v1880, %v1879
  %v1891 = vpack.c.bf16 %v1882, %v1881
  %v1892 = vpack.c.bf16 %v1884, %v1883
  %v1893 = vpack.c.bf16 %v1886, %v1885
  %v1894 = vpack.c.bf16 %v1888, %v1887
  %v1895 = vld [vmem:[%s4] sm:$0xff]
  %v1896 = vld [vmem:[%s4 + $0x8] sm:$0xff]
  %v1897 = vld [vmem:[%s4 + $0x10] sm:$0xff]
  %v1898 = vld [vmem:[%s4 + $0x18] sm:$0xf]
  %v1899 = vld [vmem:[%s4 + $0x1c] sm:$0xff]
  %v1900 = vld [vmem:[%s4 + $0x24] sm:$0xff]
  %v1901 = vld [vmem:[%s4 + $0x2c] sm:$0xff]
  %v1902 = vld [vmem:[%s4 + $0x34] sm:$0xf]
  %v1911 = vunpack.c.l.b16 %v1895
  %v1912 = vunpack.c.h.b16 %v1895
  %v1913 = vunpack.c.l.b16 %v1896
  %v1914 = vunpack.c.h.b16 %v1896
  %v1915 = vunpack.c.l.b16 %v1897
  %v1916 = vunpack.c.h.b16 %v1897
  %v1917 = vunpack.c.l.b16 %v1898
  %v1918 = vunpack.c.l.b16 %v1899
  %v1919 = vunpack.c.h.b16 %v1899
  %v1920 = vunpack.c.l.b16 %v1900
  %v1921 = vunpack.c.h.b16 %v1900
  %v1922 = vunpack.c.l.b16 %v1901
  %v1923 = vunpack.c.h.b16 %v1901
  %v1924 = vunpack.c.l.b16 %v1902
  %v1925 = vpack.c.b16 %v1918, %v1911
  %v1926 = vpack.c.b16 %v1919, %v1912
  %v1927 = vpack.c.b16 %v1920, %v1913
  %v1928 = vpack.c.b16 %v1921, %v1914
  %v1929 = vpack.c.b16 %v1922, %v1915
  %v1930 = vpack.c.b16 %v1923, %v1916
  %v1931 = vpack.c.b16 %v1924, %v1917
  %vm1939 = vcmask 130048
  %v1941 = vsel %vm1939, %v1889, 0
  %v1944 = vsel %vm1939, %v1890, 0
  %v1947 = vsel %vm1939, %v1891, 0
  %v1950 = vsel %vm1939, %v1892, 0
  %v1953 = vsel %vm1939, %v1893, 0
  %v1956 = vsel %vm1939, %v1894, 0
  %1958 = vmatprep.subr.bf16.mxu0 %v1926
  %1959 = vmatpush1.bf16.msra.mxu0 %v1925
  %1960 = vmatprep.subr.bf16.mxu0 0
  %1961 = vmatpush1.bf16.msra.mxu0 0
  %1962 = vmatprep.subr.bf16.mxu0 0
  %1963 = vmatpush1.bf16.msra.mxu0 0
  %1964 = vmatprep.subr.bf16.mxu0 0
  %1965 = vmatpush1.bf16.msra.mxu0 0
  %1966 = vmatprep.subr.bf16.mxu0 0
  %1967 = vmatpush1.bf16.msra.mxu0 0
  %1968 = vmatprep.subr.bf16.mxu0 0
  %1969 = vmatpush1.bf16.msra.mxu0 0
  %1970 = vmatprep.subr.bf16.mxu0 0
  %1971 = vmatpush1.bf16.msra.mxu0 0
  %1972 = vmatprep.subr.bf16.mxu0 0
  %1973 = vmatpush1.bf16.msra.mxu0 0
  %1974 = vmatprep.subr.bf16.mxu0 0
  %1975 = vmatpush1.bf16.msra.mxu0 0
  %1976 = vmatprep.subr.bf16.mxu0 0
  %1977 = vmatpush1.bf16.msra.mxu0 0
  %1978 = vmatprep.subr.bf16.mxu0 0
  %1979 = vmatpush1.bf16.msra.mxu0 0
  %1980 = vmatprep.subr.bf16.mxu0 0
  %1981 = vmatpush1.bf16.msra.mxu0 0
  %1982 = vmatprep.subr.bf16.mxu0 0
  %1983 = vmatpush1.bf16.msra.mxu0 0
  %1984 = vmatprep.subr.bf16.mxu0 0
  %1985 = vmatpush1.bf16.msra.mxu0 0
  %1986 = vmatprep.subr.bf16.mxu0 0
  %1987 = vmatpush1.bf16.msra.mxu0 0
  %1988 = vmatprep.subr.bf16.mxu0 0
  %1989 = vmatpush1.bf16.msra.mxu0 0
  %1990 = vmatprep.mubr.bf16.mxu0 0
  %1991 = vmatmul.mubr.bf16.gmra.mrb[0].mxu0 %v1941
  %v1992 = vpop.f32.mrb[0].mxu0
  %v1993 = vadd.f32 0.0, %v1992
  %v1994 = vpop.f32.mrb[0].mxu0
  %v1995 = vadd.f32 0.0, %v1994
  %v1996 = vpop.f32.mrb[0].mxu0
  %v1997 = vadd.f32 0.0, %v1996
  %v1998 = vpop.f32.mrb[0].mxu0
  %v1999 = vadd.f32 0.0, %v1998
  %2000 = vmatprep.mubr.bf16.mxu0 0
  %2001 = vmatmul.mubr.bf16.gmra.mrb[0].mxu0 %v1944
  %v2002 = vpop.f32.mrb[0].mxu0
  %v2003 = vadd.f32 0.0, %v2002
  %v2004 = vpop.f32.mrb[0].mxu0
  %v2005 = vadd.f32 0.0, %v2004
  %v2006 = vpop.f32.mrb[0].mxu0
  %v2007 = vadd.f32 0.0, %v2006
  %v2008 = vpop.f32.mrb[0].mxu0
  %v2009 = vadd.f32 0.0, %v2008
  %2010 = vmatprep.mubr.bf16.mxu0 0
  %2011 = vmatmul.mubr.bf16.gmra.mrb[0].mxu0 %v1947
  %v2012 = vpop.f32.mrb[0].mxu0
  %v2013 = vadd.f32 0.0, %v2012
  %v2014 = vpop.f32.mrb[0].mxu0
  %v2015 = vadd.f32 0.0, %v2014
  %v2016 = vpop.f32.mrb[0].mxu0
  %v2017 = vadd.f32 0.0, %v2016
  %v2018 = vpop.f32.mrb[0].mxu0
  %v2019 = vadd.f32 0.0, %v2018
  %2020 = vmatprep.mubr.bf16.mxu0 0
  %2021 = vmatmul.mubr.bf16.gmra.mrb[0].mxu0 %v1950
  %v2022 = vpop.f32.mrb[0].mxu0
  %v2023 = vadd.f32 0.0, %v2022
  %v2024 = vpop.f32.mrb[0].mxu0
  %v2025 = vadd.f32 0.0, %v2024
  %v2026 = vpop.f32.mrb[0].mxu0
  %v2027 = vadd.f32 0.0, %v2026
  %v2028 = vpop.f32.mrb[0].mxu0
  %v2029 = vadd.f32 0.0, %v2028
  %2030 = vmatprep.mubr.bf16.mxu0 0
  %2031 = vmatmul.mubr.bf16.gmra.mrb[0].mxu0 %v1953
  %v2032 = vpop.f32.mrb[0].mxu0
  %v2033 = vadd.f32 0.0, %v2032
  %v2034 = vpop.f32.mrb[0].mxu0
  %v2035 = vadd.f32 0.0, %v2034
  %v2036 = vpop.f32.mrb[0].mxu0
  %v2037 = vadd.f32 0.0, %v2036
  %v2038 = vpop.f32.mrb[0].mxu0
  %v2039 = vadd.f32 0.0, %v2038
  %2040 = vmatprep.mubr.bf16.mxu0 0
  %2041 = vmatmul.mubr.bf16.gmra.mrb[0].mxu0 %v1956
  %v2042 = vpop.f32.mrb[0].mxu0
  %v2043 = vadd.f32 0.0, %v2042
  %v2044 = vpop.f32.mrb[0].mxu0
  %v2045 = vadd.f32 0.0, %v2044
  %v2046 = vpop.f32.mrb[0].mxu0
  %v2047 = vadd.f32 0.0, %v2046
  %v2048 = vpop.f32.mrb[0].mxu0
  %v2049 = vadd.f32 0.0, %v2048
  %2050 = vdwg.mxu0
  %2051 = vmatprep.subr.bf16.mxu0 %v1928
  %2052 = vmatpush1.bf16.msra.mxu0 %v1927
  %2053 = vmatprep.subr.bf16.mxu0 0
  %2054 = vmatpush1.bf16.msra.mxu0 0
  %2055 = vmatprep.subr.bf16.mxu0 0
  %2056 = vmatpush1.bf16.msra.mxu0 0
  %2057 = vmatprep.subr.bf16.mxu0 0
  %2058 = vmatpush1.bf16.msra.mxu0 0
  %2059 = vmatprep.subr.bf16.mxu0 0
  %2060 = vmatpush1.bf16.msra.mxu0 0
  %2061 = vmatprep.subr.bf16.mxu0 0
  %2062 = vmatpush1.bf16.msra.mxu0 0
  %2063 = vmatprep.subr.bf16.mxu0 0
  %2064 = vmatpush1.bf16.msra.mxu0 0
  %2065 = vmatprep.subr.bf16.mxu0 0
  %2066 = vmatpush1.bf16.msra.mxu0 0
  %2067 = vmatprep.subr.bf16.mxu0 0
  %2068 = vmatpush1.bf16.msra.mxu0 0
  %2069 = vmatprep.subr.bf16.mxu0 0
  %2070 = vmatpush1.bf16.msra.mxu0 0
  %2071 = vmatprep.subr.bf16.mxu0 0
  %2072 = vmatpush1.bf16.msra.mxu0 0
  %2073 = vmatprep.subr.bf16.mxu0 0
  %2074 = vmatpush1.bf16.msra.mxu0 0
  %2075 = vmatprep.subr.bf16.mxu0 0
  %2076 = vmatpush1.bf16.msra.mxu0 0
  %2077 = vmatprep.subr.bf16.mxu0 0
  %2078 = vmatpush1.bf16.msra.mxu0 0
  %2079 = vmatprep.subr.bf16.mxu0 0
  %2080 = vmatpush1.bf16.msra.mxu0 0
  %2081 = vmatprep.subr.bf16.mxu0 0
  %2082 = vmatpush1.bf16.msra.mxu0 0
  %2083 = vmatprep.mubr.bf16.mxu0 0
  %2084 = vmatmul.mubr.bf16.gmra.mrb[0].mxu0 %v1941
  %v2085 = vpop.f32.mrb[0].mxu0
  %v2086 = vadd.f32 0.0, %v2085
  %v2087 = vpop.f32.mrb[0].mxu0
  %v2088 = vadd.f32 0.0, %v2087
  %v2089 = vpop.f32.mrb[0].mxu0
  %v2090 = vadd.f32 0.0, %v2089
  %v2091 = vpop.f32.mrb[0].mxu0
  %v2092 = vadd.f32 0.0, %v2091
  %2093 = vmatprep.mubr.bf16.mxu0 0
  %2094 = vmatmul.mubr.bf16.gmra.mrb[0].mxu0 %v1944
  %v2095 = vpop.f32.mrb[0].mxu0
  %v2096 = vadd.f32 0.0, %v2095
  %v2097 = vpop.f32.mrb[0].mxu0
  %v2098 = vadd.f32 0.0, %v2097
  %v2099 = vpop.f32.mrb[0].mxu0
  %v2100 = vadd.f32 0.0, %v2099
  %v2101 = vpop.f32.mrb[0].mxu0
  %v2102 = vadd.f32 0.0, %v2101
  %2103 = vmatprep.mubr.bf16.mxu0 0
  %2104 = vmatmul.mubr.bf16.gmra.mrb[0].mxu0 %v1947
  %v2105 = vpop.f32.mrb[0].mxu0
  %v2106 = vadd.f32 0.0, %v2105
  %v2107 = vpop.f32.mrb[0].mxu0
  %v2108 = vadd.f32 0.0, %v2107
  %v2109 = vpop.f32.mrb[0].mxu0
  %v2110 = vadd.f32 0.0, %v2109
  %v2111 = vpop.f32.mrb[0].mxu0
  %v2112 = vadd.f32 0.0, %v2111
  %2113 = vmatprep.mubr.bf16.mxu0 0
  %2114 = vmatmul.mubr.bf16.gmra.mrb[0].mxu0 %v1950
  %v2115 = vpop.f32.mrb[0].mxu0
  %v2116 = vadd.f32 0.0, %v2115
  %v2117 = vpop.f32.mrb[0].mxu0
  %v2118 = vadd.f32 0.0, %v2117
  %v2119 = vpop.f32.mrb[0].mxu0
  %v2120 = vadd.f32 0.0, %v2119
  %v2121 = vpop.f32.mrb[0].mxu0
  %v2122 = vadd.f32 0.0, %v2121
  %2123 = vmatprep.mubr.bf16.mxu0 0
  %2124 = vmatmul.mubr.bf16.gmra.mrb[0].mxu0 %v1953
  %v2125 = vpop.f32.mrb[0].mxu0
  %v2126 = vadd.f32 0.0, %v2125
  %v2127 = vpop.f32.mrb[0].mxu0
  %v2128 = vadd.f32 0.0, %v2127
  %v2129 = vpop.f32.mrb[0].mxu0
  %v2130 = vadd.f32 0.0, %v2129
  %v2131 = vpop.f32.mrb[0].mxu0
  %v2132 = vadd.f32 0.0, %v2131
  %2133 = vmatprep.mubr.bf16.mxu0 0
  %2134 = vmatmul.mubr.bf16.gmra.mrb[0].mxu0 %v1956
  %v2135 = vpop.f32.mrb[0].mxu0
  %v2136 = vadd.f32 0.0, %v2135
  %v2137 = vpop.f32.mrb[0].mxu0
  %v2138 = vadd.f32 0.0, %v2137
  %v2139 = vpop.f32.mrb[0].mxu0
  %v2140 = vadd.f32 0.0, %v2139
  %v2141 = vpop.f32.mrb[0].mxu0
  %v2142 = vadd.f32 0.0, %v2141
  %2143 = vdwg.mxu0
  %2144 = vmatprep.subr.bf16.mxu0 %v1930
  %2145 = vmatpush1.bf16.msra.mxu0 %v1929
  %2146 = vmatprep.subr.bf16.mxu0 0
  %2147 = vmatpush1.bf16.msra.mxu0 0
  %2148 = vmatprep.subr.bf16.mxu0 0
  %2149 = vmatpush1.bf16.msra.mxu0 0
  %2150 = vmatprep.subr.bf16.mxu0 0
  %2151 = vmatpush1.bf16.msra.mxu0 0
  %2152 = vmatprep.subr.bf16.mxu0 0
  %2153 = vmatpush1.bf16.msra.mxu0 0
  %2154 = vmatprep.subr.bf16.mxu0 0
  %2155 = vmatpush1.bf16.msra.mxu0 0
  %2156 = vmatprep.subr.bf16.mxu0 0
  %2157 = vmatpush1.bf16.msra.mxu0 0
  %2158 = vmatprep.subr.bf16.mxu0 0
  %2159 = vmatpush1.bf16.msra.mxu0 0
  %2160 = vmatprep.subr.bf16.mxu0 0
  %2161 = vmatpush1.bf16.msra.mxu0 0
  %2162 = vmatprep.subr.bf16.mxu0 0
  %2163 = vmatpush1.bf16.msra.mxu0 0
  %2164 = vmatprep.subr.bf16.mxu0 0
  %2165 = vmatpush1.bf16.msra.mxu0 0
  %2166 = vmatprep.subr.bf16.mxu0 0
  %2167 = vmatpush1.bf16.msra.mxu0 0
  %2168 = vmatprep.subr.bf16.mxu0 0
  %2169 = vmatpush1.bf16.msra.mxu0 0
  %2170 = vmatprep.subr.bf16.mxu0 0
  %2171 = vmatpush1.bf16.msra.mxu0 0
  %2172 = vmatprep.subr.bf16.mxu0 0
  %2173 = vmatpush1.bf16.msra.mxu0 0
  %2174 = vmatprep.subr.bf16.mxu0 0
  %2175 = vmatpush1.bf16.msra.mxu0 0
  %2176 = vmatprep.mubr.bf16.mxu0 0
  %2177 = vmatmul.mubr.bf16.gmra.mrb[0].mxu0 %v1941
  %v2178 = vpop.f32.mrb[0].mxu0
  %v2179 = vadd.f32 0.0, %v2178
  %v2180 = vpop.f32.mrb[0].mxu0
  %v2181 = vadd.f32 0.0, %v2180
  %v2182 = vpop.f32.mrb[0].mxu0
  %v2183 = vadd.f32 0.0, %v2182
  %v2184 = vpop.f32.mrb[0].mxu0
  %v2185 = vadd.f32 0.0, %v2184
  %2186 = vmatprep.mubr.bf16.mxu0 0
  %2187 = vmatmul.mubr.bf16.gmra.mrb[0].mxu0 %v1944
  %v2188 = vpop.f32.mrb[0].mxu0
  %v2189 = vadd.f32 0.0, %v2188
  %v2190 = vpop.f32.mrb[0].mxu0
  %v2191 = vadd.f32 0.0, %v2190
  %v2192 = vpop.f32.mrb[0].mxu0
  %v2193 = vadd.f32 0.0, %v2192
  %v2194 = vpop.f32.mrb[0].mxu0
  %v2195 = vadd.f32 0.0, %v2194
  %2196 = vmatprep.mubr.bf16.mxu0 0
  %2197 = vmatmul.mubr.bf16.gmra.mrb[0].mxu0 %v1947
  %v2198 = vpop.f32.mrb[0].mxu0
  %v2199 = vadd.f32 0.0, %v2198
  %v2200 = vpop.f32.mrb[0].mxu0
  %v2201 = vadd.f32 0.0, %v2200
  %v2202 = vpop.f32.mrb[0].mxu0
  %v2203 = vadd.f32 0.0, %v2202
  %v2204 = vpop.f32.mrb[0].mxu0
  %v2205 = vadd.f32 0.0, %v2204
  %2206 = vmatprep.mubr.bf16.mxu0 0
  %2207 = vmatmul.mubr.bf16.gmra.mrb[0].mxu0 %v1950
  %v2208 = vpop.f32.mrb[0].mxu0
  %v2209 = vadd.f32 0.0, %v2208
  %v2210 = vpop.f32.mrb[0].mxu0
  %v2211 = vadd.f32 0.0, %v2210
  %v2212 = vpop.f32.mrb[0].mxu0
  %v2213 = vadd.f32 0.0, %v2212
  %v2214 = vpop.f32.mrb[0].mxu0
  %v2215 = vadd.f32 0.0, %v2214
  %2216 = vmatprep.mubr.bf16.mxu0 0
  %2217 = vmatmul.mubr.bf16.gmra.mrb[0].mxu0 %v1953
  %v2218 = vpop.f32.mrb[0].mxu0
  %v2219 = vadd.f32 0.0, %v2218
  %v2220 = vpop.f32.mrb[0].mxu0
  %v2221 = vadd.f32 0.0, %v2220
  %v2222 = vpop.f32.mrb[0].mxu0
  %v2223 = vadd.f32 0.0, %v2222
  %v2224 = vpop.f32.mrb[0].mxu0
  %v2225 = vadd.f32 0.0, %v2224
  %2226 = vmatprep.mubr.bf16.mxu0 0
  %2227 = vmatmul.mubr.bf16.gmra.mrb[0].mxu0 %v1956
  %v2228 = vpop.f32.mrb[0].mxu0
  %v2229 = vadd.f32 0.0, %v2228
  %v2230 = vpop.f32.mrb[0].mxu0
  %v2231 = vadd.f32 0.0, %v2230
  %v2232 = vpop.f32.mrb[0].mxu0
  %v2233 = vadd.f32 0.0, %v2232
  %v2234 = vpop.f32.mrb[0].mxu0
  %v2235 = vadd.f32 0.0, %v2234
  %2236 = vdwg.mxu0
  %2237 = vmatprep.subr.bf16.mxu0 0
  %2238 = vmatpush1.bf16.msra.mxu0 %v1931
  %2239 = vmatprep.subr.bf16.mxu0 0
  %2240 = vmatpush1.bf16.msra.mxu0 0
  %2241 = vmatprep.subr.bf16.mxu0 0
  %2242 = vmatpush1.bf16.msra.mxu0 0
  %2243 = vmatprep.subr.bf16.mxu0 0
  %2244 = vmatpush1.bf16.msra.mxu0 0
  %2245 = vmatprep.subr.bf16.mxu0 0
  %2246 = vmatpush1.bf16.msra.mxu0 0
  %2247 = vmatprep.subr.bf16.mxu0 0
  %2248 = vmatpush1.bf16.msra.mxu0 0
  %2249 = vmatprep.subr.bf16.mxu0 0
  %2250 = vmatpush1.bf16.msra.mxu0 0
  %2251 = vmatprep.subr.bf16.mxu0 0
  %2252 = vmatpush1.bf16.msra.mxu0 0
  %2253 = vmatprep.subr.bf16.mxu0 0
  %2254 = vmatpush1.bf16.msra.mxu0 0
  %2255 = vmatprep.subr.bf16.mxu0 0
  %2256 = vmatpush1.bf16.msra.mxu0 0
  %2257 = vmatprep.subr.bf16.mxu0 0
  %2258 = vmatpush1.bf16.msra.mxu0 0
  %2259 = vmatprep.subr.bf16.mxu0 0
  %2260 = vmatpush1.bf16.msra.mxu0 0
  %2261 = vmatprep.subr.bf16.mxu0 0
  %2262 = vmatpush1.bf16.msra.mxu0 0
  %2263 = vmatprep.subr.bf16.mxu0 0
  %2264 = vmatpush1.bf16.msra.mxu0 0
  %2265 = vmatprep.subr.bf16.mxu0 0
  %2266 = vmatpush1.bf16.msra.mxu0 0
  %2267 = vmatprep.subr.bf16.mxu0 0
  %2268 = vmatpush1.bf16.msra.mxu0 0
  %2269 = vmatprep.mubr.bf16.mxu0 0
  %2270 = vmatmul.mubr.bf16.gmra.mrb[0].mxu0 %v1941
  %v2271 = vpop.f32.mrb[0].mxu0
  %v2272 = vadd.f32 0.0, %v2271
  %v2273 = vpop.f32.mrb[0].mxu0
  %v2274 = vpop.f32.mrb[0].mxu0
  %v2275 = vadd.f32 0.0, %v2274
  %v2276 = vpop.f32.mrb[0].mxu0
  %2277 = vmatprep.mubr.bf16.mxu0 0
  %2278 = vmatmul.mubr.bf16.gmra.mrb[0].mxu0 %v1944
  %v2279 = vpop.f32.mrb[0].mxu0
  %v2280 = vadd.f32 0.0, %v2279
  %v2281 = vpop.f32.mrb[0].mxu0
  %v2282 = vpop.f32.mrb[0].mxu0
  %v2283 = vadd.f32 0.0, %v2282
  %v2284 = vpop.f32.mrb[0].mxu0
  %2285 = vmatprep.mubr.bf16.mxu0 0
  %2286 = vmatmul.mubr.bf16.gmra.mrb[0].mxu0 %v1947
  %v2287 = vpop.f32.mrb[0].mxu0
  %v2288 = vadd.f32 0.0, %v2287
  %v2289 = vpop.f32.mrb[0].mxu0
  %v2290 = vpop.f32.mrb[0].mxu0
  %v2291 = vadd.f32 0.0, %v2290
  %v2292 = vpop.f32.mrb[0].mxu0
  %2293 = vmatprep.mubr.bf16.mxu0 0
  %2294 = vmatmul.mubr.bf16.gmra.mrb[0].mxu0 %v1950
  %v2295 = vpop.f32.mrb[0].mxu0
  %v2296 = vadd.f32 0.0, %v2295
  %v2297 = vpop.f32.mrb[0].mxu0
  %v2298 = vpop.f32.mrb[0].mxu0
  %v2299 = vadd.f32 0.0, %v2298
  %v2300 = vpop.f32.mrb[0].mxu0
  %2301 = vmatprep.mubr.bf16.mxu0 0
  %2302 = vmatmul.mubr.bf16.gmra.mrb[0].mxu0 %v1953
  %v2303 = vpop.f32.mrb[0].mxu0
  %v2304 = vadd.f32 0.0, %v2303
  %v2305 = vpop.f32.mrb[0].mxu0
  %v2306 = vpop.f32.mrb[0].mxu0
  %v2307 = vadd.f32 0.0, %v2306
  %v2308 = vpop.f32.mrb[0].mxu0
  %2309 = vmatprep.mubr.bf16.mxu0 0
  %2310 = vmatmul.mubr.bf16.gmra.mrb[0].mxu0 %v1956
  %v2311 = vpop.f32.mrb[0].mxu0
  %v2312 = vadd.f32 0.0, %v2311
  %v2313 = vpop.f32.mrb[0].mxu0
  %v2314 = vpop.f32.mrb[0].mxu0
  %v2315 = vadd.f32 0.0, %v2314
  %v2316 = vpop.f32.mrb[0].mxu0
  %2317 = vdwg.mxu0
  %v2318 = vmul.f32 %v1993, %v1462
  %v2319 = vmul.f32 %v1995, %v1464
  %v2320 = vmul.f32 %v2086, %v1503
  %v2321 = vmul.f32 %v2088, %v1505
  %v2322 = vmul.f32 %v2179, %v1544
  %v2323 = vmul.f32 %v2181, %v1546
  %v2324 = vmul.f32 %v2272, %v1585
  %v2325 = vadd.f32 %v2007, %v2318
  %v2326 = vadd.f32 %v2009, %v2319
  %v2327 = vadd.f32 %v2100, %v2320
  %v2328 = vadd.f32 %v2102, %v2321
  %v2329 = vadd.f32 %v2193, %v2322
  %v2330 = vadd.f32 %v2195, %v2323
  %v2331 = vadd.f32 %v2283, %v2324
  %v2332 = vmul.f32 %v1997, %v1587
  %v2333 = vmul.f32 %v1999, %v1626
  %v2334 = vmul.f32 %v2090, %v1628
  %v2335 = vmul.f32 %v2092, %v1667
  %v2336 = vmul.f32 %v2183, %v1669
  %v2337 = vmul.f32 %v2185, %v1708
  %v2338 = vmul.f32 %v2275, %v1710
  %v2339 = vadd.f32 %v2325, %v2332
  %v2340 = vadd.f32 %v2326, %v2333
  %v2341 = vadd.f32 %v2327, %v2334
  %v2342 = vadd.f32 %v2328, %v2335
  %v2343 = vadd.f32 %v2329, %v2336
  %v2344 = vadd.f32 %v2330, %v2337
  %v2345 = vadd.f32 %v2331, %v2338
  %v2346 = vmul.f32 %v2003, %v1749
  %v2347 = vmul.f32 %v2005, %v1751
  %v2348 = vmul.f32 %v2096, %v1790
  %v2349 = vmul.f32 %v2098, %v1792
  %v2350 = vmul.f32 %v2189, %v1831
  %v2351 = vmul.f32 %v2191, %v1833
  %v2352 = vmul.f32 %v2280, %v1872
  %v2353 = vadd.f32 %v2339, %v2346
  %v2354 = vadd.f32 %v2340, %v2347
  %v2355 = vadd.f32 %v2341, %v2348
  %v2356 = vadd.f32 %v2342, %v2349
  %v2357 = vadd.f32 %v2343, %v2350
  %v2358 = vadd.f32 %v2344, %v2351
  %v2359 = vadd.f32 %v2345, %v2352
  %2360 = vst [vmem:[%s6] sm:$0xff] %v2353
  %2361 = vst [vmem:[%s6 + $0x8] sm:$0xff] %v2354
  %2362 = vst [vmem:[%s6 + $0x10] sm:$0xff] %v2355
  %2363 = vst [vmem:[%s6 + $0x18] sm:$0xff] %v2356
  %2364 = vst [vmem:[%s6 + $0x20] sm:$0xff] %v2357
  %2365 = vst [vmem:[%s6 + $0x28] sm:$0xff] %v2358
  %2366 = vst [vmem:[%s6 + $0x30] sm:$0xff] %v2359
  %2367 = vst [vmem:[#allocation2] sm:$0xff] %v2353
  %2368 = vst [vmem:[#allocation2 + $0x8] sm:$0xff] %v2354
  %2369 = vst [vmem:[#allocation2 + $0x10] sm:$0xff] %v2355
  %2370 = vst [vmem:[#allocation2 + $0x18] sm:$0xff] %v2356
  %2371 = vst [vmem:[#allocation2 + $0x20] sm:$0xff] %v2357
  %2372 = vst [vmem:[#allocation2 + $0x28] sm:$0xff] %v2358
  %2373 = vst [vmem:[#allocation2 + $0x30] sm:$0xff] %v2359
  %v2374 = vmul.f32 %v2013, %v1462
  %v2375 = vmul.f32 %v2015, %v1464
  %v2376 = vmul.f32 %v2106, %v1503
  %v2377 = vmul.f32 %v2108, %v1505
  %v2378 = vmul.f32 %v2199, %v1544
  %v2379 = vmul.f32 %v2201, %v1546
  %v2380 = vmul.f32 %v2288, %v1585
  %v2381 = vadd.f32 %v2027, %v2374
  %v2382 = vadd.f32 %v2029, %v2375
  %v2383 = vadd.f32 %v2120, %v2376
  %v2384 = vadd.f32 %v2122, %v2377
  %v2385 = vadd.f32 %v2213, %v2378
  %v2386 = vadd.f32 %v2215, %v2379
  %v2387 = vadd.f32 %v2299, %v2380
  %v2388 = vmul.f32 %v2017, %v1587
  %v2389 = vmul.f32 %v2019, %v1626
  %v2390 = vmul.f32 %v2110, %v1628
  %v2391 = vmul.f32 %v2112, %v1667
  %v2392 = vmul.f32 %v2203, %v1669
  %v2393 = vmul.f32 %v2205, %v1708
  %v2394 = vmul.f32 %v2291, %v1710
  %v2395 = vadd.f32 %v2381, %v2388
  %v2396 = vadd.f32 %v2382, %v2389
  %v2397 = vadd.f32 %v2383, %v2390
  %v2398 = vadd.f32 %v2384, %v2391
  %v2399 = vadd.f32 %v2385, %v2392
  %v2400 = vadd.f32 %v2386, %v2393
  %v2401 = vadd.f32 %v2387, %v2394
  %v2402 = vmul.f32 %v2023, %v1749
  %v2403 = vmul.f32 %v2025, %v1751
  %v2404 = vmul.f32 %v2116, %v1790
  %v2405 = vmul.f32 %v2118, %v1792
  %v2406 = vmul.f32 %v2209, %v1831
  %v2407 = vmul.f32 %v2211, %v1833
  %v2408 = vmul.f32 %v2296, %v1872
  %v2409 = vadd.f32 %v2395, %v2402
  %v2410 = vadd.f32 %v2396, %v2403
  %v2411 = vadd.f32 %v2397, %v2404
  %v2412 = vadd.f32 %v2398, %v2405
  %v2413 = vadd.f32 %v2399, %v2406
  %v2414 = vadd.f32 %v2400, %v2407
  %v2415 = vadd.f32 %v2401, %v2408
  %2416 = vst [vmem:[%s6 + $0x38] sm:$0xff] %v2409
  %2417 = vst [vmem:[%s6 + $0x40] sm:$0xff] %v2410
  %2418 = vst [vmem:[%s6 + $0x48] sm:$0xff] %v2411
  %2419 = vst [vmem:[%s6 + $0x50] sm:$0xff] %v2412
  %2420 = vst [vmem:[%s6 + $0x58] sm:$0xff] %v2413
  %2421 = vst [vmem:[%s6 + $0x60] sm:$0xff] %v2414
  %2422 = vst [vmem:[%s6 + $0x68] sm:$0xff] %v2415
  %2423 = vst [vmem:[#allocation2 + $0x38] sm:$0xff] %v2409
  %2424 = vst [vmem:[#allocation2 + $0x40] sm:$0xff] %v2410
  %2425 = vst [vmem:[#allocation2 + $0x48] sm:$0xff] %v2411
  %2426 = vst [vmem:[#allocation2 + $0x50] sm:$0xff] %v2412
  %2427 = vst [vmem:[#allocation2 + $0x58] sm:$0xff] %v2413
  %2428 = vst [vmem:[#allocation2 + $0x60] sm:$0xff] %v2414
  %2429 = vst [vmem:[#allocation2 + $0x68] sm:$0xff] %v2415
  %v2430 = vmul.f32 %v2033, %v1462
  %v2431 = vmul.f32 %v2035, %v1464
  %v2432 = vmul.f32 %v2126, %v1503
  %v2433 = vmul.f32 %v2128, %v1505
  %v2434 = vmul.f32 %v2219, %v1544
  %v2435 = vmul.f32 %v2221, %v1546
  %v2436 = vmul.f32 %v2304, %v1585
  %v2437 = vadd.f32 %v2047, %v2430
  %v2438 = vadd.f32 %v2049, %v2431
  %v2439 = vadd.f32 %v2140, %v2432
  %v2440 = vadd.f32 %v2142, %v2433
  %v2441 = vadd.f32 %v2233, %v2434
  %v2442 = vadd.f32 %v2235, %v2435
  %v2443 = vadd.f32 %v2315, %v2436
  %v2444 = vmul.f32 %v2037, %v1587
  %v2445 = vmul.f32 %v2039, %v1626
  %v2446 = vmul.f32 %v2130, %v1628
  %v2447 = vmul.f32 %v2132, %v1667
  %v2448 = vmul.f32 %v2223, %v1669
  %v2449 = vmul.f32 %v2225, %v1708
  %v2450 = vmul.f32 %v2307, %v1710
  %v2451 = vadd.f32 %v2437, %v2444
  %v2452 = vadd.f32 %v2438, %v2445
  %v2453 = vadd.f32 %v2439, %v2446
  %v2454 = vadd.f32 %v2440, %v2447
  %v2455 = vadd.f32 %v2441, %v2448
  %v2456 = vadd.f32 %v2442, %v2449
  %v2457 = vadd.f32 %v2443, %v2450
  %v2458 = vmul.f32 %v2043, %v1749
  %v2459 = vmul.f32 %v2045, %v1751
  %v2460 = vmul.f32 %v2136, %v1790
  %v2461 = vmul.f32 %v2138, %v1792
  %v2462 = vmul.f32 %v2229, %v1831
  %v2463 = vmul.f32 %v2231, %v1833
  %v2464 = vmul.f32 %v2312, %v1872
  %v2465 = vadd.f32 %v2451, %v2458
  %v2466 = vadd.f32 %v2452, %v2459
  %v2467 = vadd.f32 %v2453, %v2460
  %v2468 = vadd.f32 %v2454, %v2461
  %v2469 = vadd.f32 %v2455, %v2462
  %v2470 = vadd.f32 %v2456, %v2463
  %v2471 = vadd.f32 %v2457, %v2464
  %2472 = vst [vmem:[%s6 + $0x70] sm:$0xff] %v2465
  %2473 = vst [vmem:[%s6 + $0x78] sm:$0xff] %v2466
  %2474 = vst [vmem:[%s6 + $0x80] sm:$0xff] %v2467
  %2475 = vst [vmem:[%s6 + $0x88] sm:$0xff] %v2468
  %2476 = vst [vmem:[%s6 + $0x90] sm:$0xff] %v2469
  %2477 = vst [vmem:[%s6 + $0x98] sm:$0xff] %v2470
  %2478 = vst [vmem:[%s6 + $0xa0] sm:$0xff] %v2471
  %2479 = vst [vmem:[#allocation2 + $0x70] sm:$0xff] %v2465
  %2480 = vst [vmem:[#allocation2 + $0x78] sm:$0xff] %v2466
  %2481 = vst [vmem:[#allocation2 + $0x80] sm:$0xff] %v2467
  %2482 = vst [vmem:[#allocation2 + $0x88] sm:$0xff] %v2468
  %2483 = vst [vmem:[#allocation2 + $0x90] sm:$0xff] %v2469
  %2484 = vst [vmem:[#allocation2 + $0x98] sm:$0xff] %v2470
  %2485 = vst [vmem:[#allocation2 + $0xa0] sm:$0xff] %v2471
  %v2486 = vld [vmem:[#allocation2] sm:$0xff]
  %v2487 = vld [vmem:[#allocation2 + $0x8] sm:$0xff]
  %v2488 = vld [vmem:[#allocation2 + $0x10] sm:$0xff]
  %v2489 = vld [vmem:[#allocation2 + $0x18] sm:$0xff]
  %v2490 = vld [vmem:[#allocation2 + $0x20] sm:$0xff]
  %v2491 = vld [vmem:[#allocation2 + $0x28] sm:$0xff]
  %v2492 = vld [vmem:[#allocation2 + $0x30] sm:$0xff]
  %v2493 = vld [vmem:[#allocation2 + $0x38] sm:$0xff]
  %v2494 = vld [vmem:[#allocation2 + $0x40] sm:$0xff]
  %v2495 = vld [vmem:[#allocation2 + $0x48] sm:$0xff]
  %v2496 = vld [vmem:[#allocation2 + $0x50] sm:$0xff]
  %v2497 = vld [vmem:[#allocation2 + $0x58] sm:$0xff]
  %v2498 = vld [vmem:[#allocation2 + $0x60] sm:$0xff]
  %v2499 = vld [vmem:[#allocation2 + $0x68] sm:$0xff]
  %v2500 = vld [vmem:[#allocation2 + $0x70] sm:$0xff]
  %v2501 = vld [vmem:[#allocation2 + $0x78] sm:$0xff]
  %v2502 = vld [vmem:[#allocation2 + $0x80] sm:$0xff]
  %v2503 = vld [vmem:[#allocation2 + $0x88] sm:$0xff]
  %v2504 = vld [vmem:[#allocation2 + $0x90] sm:$0xff]
  %v2505 = vld [vmem:[#allocation2 + $0x98] sm:$0xff]
  %v2506 = vld [vmem:[#allocation2 + $0xa0] sm:$0xff]
  %v2507 = vpack.c.bf16 %v2493, %v2486
  %v2508 = vpack.c.bf16 %v2494, %v2487
  %v2509 = vpack.c.bf16 %v2495, %v2488
  %v2510 = vpack.c.bf16 %v2496, %v2489
  %v2511 = vpack.c.bf16 %v2497, %v2490
  %v2512 = vpack.c.bf16 %v2498, %v2491
  %v2513 = vpack.c.bf16 %v2499, %v2492
  %v2514 = vpack.c.bf16 %v2500, %v2500
  %v2515 = vpack.c.bf16 %v2501, %v2501
  %v2516 = vpack.c.bf16 %v2502, %v2502
  %v2517 = vpack.c.bf16 %v2503, %v2503
  %v2518 = vpack.c.bf16 %v2504, %v2504
  %v2519 = vpack.c.bf16 %v2505, %v2505
  %v2520 = vpack.c.bf16 %v2506, %v2506
  %v2521 = vld [vmem:[%s5] sm:$0xf]
  %v2522 = vld [vmem:[%s5 + $0x4] sm:$0xf]
  %v2523 = vld [vmem:[%s5 + $0x8] sm:$0xf]
  %v2524 = vld [vmem:[%s5 + $0xc] sm:$0xf]
  %v2525 = vld [vmem:[%s5 + $0x10] sm:$0xf]
  %v2526 = vld [vmem:[%s5 + $0x14] sm:$0xf]
  %v2527 = vld [vmem:[%s5 + $0x18] sm:$0xf]
  %v2528 = vld [vmem:[%s5 + $0x1c] sm:$0xf]
  %v2529 = vld [vmem:[%s5 + $0x20] sm:$0xf]
  %v2530 = vld [vmem:[%s5 + $0x24] sm:$0xf]
  %v2531 = vld [vmem:[%s5 + $0x28] sm:$0xf]
  %v2532 = vld [vmem:[%s5 + $0x2c] sm:$0xf]
  %v2533 = vld [vmem:[%s5 + $0x30] sm:$0xf]
  %v2534 = vld [vmem:[%s5 + $0x34] sm:$0xf]
  %v2535 = vld [vmem:[%s5 + $0x38] sm:$0xf]
  %v2536 = vld [vmem:[%s5 + $0x3c] sm:$0xf]
  %v2537 = vld [vmem:[%s5 + $0x40] sm:$0xf]
  %v2538 = vld [vmem:[%s5 + $0x44] sm:$0xf]
  %v2539 = vld [vmem:[%s5 + $0x48] sm:$0xf]
  %v2540 = vld [vmem:[%s5 + $0x4c] sm:$0xf]
  %v2541 = vld [vmem:[%s5 + $0x50] sm:$0xf]
  %v2542 = vld [vmem:[%s5 + $0x54] sm:$0xf]
  %v2543 = vld [vmem:[%s5 + $0x58] sm:$0xf]
  %v2544 = vld [vmem:[%s5 + $0x5c] sm:$0xf]
  %v2545 = vld [vmem:[%s5 + $0x60] sm:$0xf]
  %v2546 = vld [vmem:[%s5 + $0x64] sm:$0xf]
  %v2547 = vld [vmem:[%s5 + $0x68] sm:$0xf]
  %v2548 = vld [vmem:[%s5 + $0x6c] sm:$0xf]
  %v2549 = vld [vmem:[%s5 + $0x70] sm:$0xf]
  %v2550 = vld [vmem:[%s5 + $0x74] sm:$0xf]
  %v2551 = vld [vmem:[%s5 + $0x78] sm:$0xf]
  %v2552 = vld [vmem:[%s5 + $0x7c] sm:$0xf]
  %v2553 = vld [vmem:[%s5 + $0x80] sm:$0xf]
  %v2554 = vld [vmem:[%s5 + $0x84] sm:$0xf]
  %v2555 = vld [vmem:[%s5 + $0x88] sm:$0xf]
  %v2556 = vld [vmem:[%s5 + $0x8c] sm:$0xf]
  %v2557 = vld [vmem:[%s5 + $0x90] sm:$0xf]
  %v2558 = vld [vmem:[%s5 + $0x94] sm:$0xf]
  %v2559 = vld [vmem:[%s5 + $0x98] sm:$0xf]
  %v2560 = vld [vmem:[%s5 + $0x9c] sm:$0xf]
  %v2561 = vld [vmem:[%s5 + $0xa0] sm:$0xf]
  %v2562 = vld [vmem:[%s5 + $0xa4] sm:$0xf]
  %v2563 = vld [vmem:[%s5 + $0xa8] sm:$0xf]
  %v2564 = vld [vmem:[%s5 + $0xac] sm:$0xf]
  %v2565 = vld [vmem:[%s5 + $0xb0] sm:$0xf]
  %v2566 = vld [vmem:[%s5 + $0xb4] sm:$0xf]
  %v2567 = vld [vmem:[%s5 + $0xb8] sm:$0xf]
  %v2568 = vld [vmem:[%s5 + $0xbc] sm:$0xf]
  %v2569 = vld [vmem:[%s5 + $0xc0] sm:$0xf]
  %v2570 = vld [vmem:[%s5 + $0xc4] sm:$0xf]
  %v2571 = vld [vmem:[%s5 + $0xc8] sm:$0xf]
  %v2572 = vld [vmem:[%s5 + $0xcc] sm:$0xf]
  %v2573 = vld [vmem:[%s5 + $0xd0] sm:$0xf]
  %v2574 = vld [vmem:[%s5 + $0xd4] sm:$0xf]
  %v2575 = vld [vmem:[%s5 + $0xd8] sm:$0xf]
  %v2576 = vld [vmem:[%s5 + $0xdc] sm:$0xf]
  %v2577 = vld [vmem:[%s5 + $0xe0] sm:$0xf]
  %v2578 = vld [vmem:[%s5 + $0xe4] sm:$0xf]
  %v2579 = vld [vmem:[%s5 + $0xe8] sm:$0xf]
  %v2580 = vld [vmem:[%s5 + $0xec] sm:$0xf]
  %v2581 = vld [vmem:[%s5 + $0xf0] sm:$0xf]
  %v2582 = vld [vmem:[%s5 + $0xf4] sm:$0xf]
  %v2583 = vld [vmem:[%s5 + $0xf8] sm:$0xf]
  %v2584 = vld [vmem:[%s5 + $0xfc] sm:$0xf]
  %v2585 = vld [vmem:[%s5 + $0x100] sm:$0xf]
  %v2586 = vld [vmem:[%s5 + $0x104] sm:$0xf]
  %v2587 = vld [vmem:[%s5 + $0x108] sm:$0xf]
  %v2588 = vld [vmem:[%s5 + $0x10c] sm:$0xf]
  %v2589 = vld [vmem:[%s5 + $0x110] sm:$0xf]
  %v2590 = vld [vmem:[%s5 + $0x114] sm:$0xf]
  %v2591 = vld [vmem:[%s5 + $0x118] sm:$0xf]
  %v2592 = vld [vmem:[%s5 + $0x11c] sm:$0xf]
  %v2593 = vld [vmem:[%s5 + $0x120] sm:$0xf]
  %v2594 = vld [vmem:[%s5 + $0x124] sm:$0xf]
  %v2595 = vld [vmem:[%s5 + $0x128] sm:$0xf]
  %v2596 = vld [vmem:[%s5 + $0x12c] sm:$0xf]
  %v2597 = vld [vmem:[%s5 + $0x130] sm:$0xf]
  %v2598 = vld [vmem:[%s5 + $0x134] sm:$0xf]
  %v2599 = vld [vmem:[%s5 + $0x138] sm:$0xf]
  %v2600 = vld [vmem:[%s5 + $0x13c] sm:$0xf]
  %v2601 = vld [vmem:[%s5 + $0x140] sm:$0xf]
  %v2602 = vld [vmem:[%s5 + $0x144] sm:$0xf]
  %v2603 = vld [vmem:[%s5 + $0x148] sm:$0xf]
  %v2604 = vld [vmem:[%s5 + $0x14c] sm:$0xf]
  %v2605 = vld [vmem:[%s5 + $0x150] sm:$0xf]
  %v2606 = vld [vmem:[%s5 + $0x154] sm:$0xf]
  %v2607 = vld [vmem:[%s5 + $0x158] sm:$0xf]
  %v2608 = vld [vmem:[%s5 + $0x15c] sm:$0xf]
  %v2609 = vld [vmem:[%s5 + $0x160] sm:$0xf]
  %v2610 = vld [vmem:[%s5 + $0x164] sm:$0xf]
  %v2611 = vld [vmem:[%s5 + $0x168] sm:$0xf]
  %v2612 = vld [vmem:[%s5 + $0x16c] sm:$0xf]
  %v2613 = vld [vmem:[%s5 + $0x170] sm:$0xf]
  %v2614 = vld [vmem:[%s5 + $0x174] sm:$0xf]
  %v2615 = vld [vmem:[%s5 + $0x178] sm:$0xf]
  %v2616 = vld [vmem:[%s5 + $0x17c] sm:$0xf]
  %v2617 = vld [vmem:[%s5 + $0x180] sm:$0xf]
  %v2618 = vld [vmem:[%s5 + $0x184] sm:$0xf]
  %v2619 = vld [vmem:[%s5 + $0x188] sm:$0xf]
  %v2620 = vld [vmem:[%s5 + $0x18c] sm:$0xf]
  %v2621 = vld [vmem:[%s5 + $0x190] sm:$0xf]
  %v2622 = vld [vmem:[%s5 + $0x194] sm:$0xf]
  %v2623 = vld [vmem:[%s5 + $0x198] sm:$0xf]
  %v2624 = vld [vmem:[%s5 + $0x19c] sm:$0xf]
  %v2625 = vld [vmem:[%s5 + $0x1a0] sm:$0xf]
  %v2626 = vld [vmem:[%s5 + $0x1a4] sm:$0xf]
  %v2627 = vld [vmem:[%s5 + $0x1a8] sm:$0xf]
  %v2628 = vld [vmem:[%s5 + $0x1ac] sm:$0xf]
  %v2629 = vld [vmem:[%s5 + $0x1b0] sm:$0xf]
  %v2630 = vld [vmem:[%s5 + $0x1b4] sm:$0xf]
  %v2631 = vld [vmem:[%s5 + $0x1b8] sm:$0xf]
  %v2632 = vld [vmem:[%s5 + $0x1bc] sm:$0xf]
  %v2745 = vunpack.c.l.b16 %v2521
  %v2746 = vunpack.c.l.b16 %v2522
  %v2747 = vunpack.c.l.b16 %v2523
  %v2748 = vunpack.c.l.b16 %v2524
  %v2749 = vunpack.c.l.b16 %v2525
  %v2750 = vunpack.c.l.b16 %v2526
  %v2751 = vunpack.c.l.b16 %v2527
  %v2752 = vunpack.c.l.b16 %v2528
  %v2753 = vunpack.c.l.b16 %v2529
  %v2754 = vunpack.c.l.b16 %v2530
  %v2755 = vunpack.c.l.b16 %v2531
  %v2756 = vunpack.c.l.b16 %v2532
  %v2757 = vunpack.c.l.b16 %v2533
  %v2758 = vunpack.c.l.b16 %v2534
  %v2759 = vunpack.c.l.b16 %v2535
  %v2760 = vunpack.c.l.b16 %v2536
  %v2761 = vunpack.c.l.b16 %v2537
  %v2762 = vunpack.c.l.b16 %v2538
  %v2763 = vunpack.c.l.b16 %v2539
  %v2764 = vunpack.c.l.b16 %v2540
  %v2765 = vunpack.c.l.b16 %v2541
  %v2766 = vunpack.c.l.b16 %v2542
  %v2767 = vunpack.c.l.b16 %v2543
  %v2768 = vunpack.c.l.b16 %v2544
  %v2769 = vunpack.c.l.b16 %v2545
  %v2770 = vunpack.c.l.b16 %v2546
  %v2771 = vunpack.c.l.b16 %v2547
  %v2772 = vunpack.c.l.b16 %v2548
  %v2773 = vunpack.c.l.b16 %v2549
  %v2774 = vunpack.c.l.b16 %v2550
  %v2775 = vunpack.c.l.b16 %v2551
  %v2776 = vunpack.c.l.b16 %v2552
  %v2777 = vunpack.c.l.b16 %v2553
  %v2778 = vunpack.c.l.b16 %v2554
  %v2779 = vunpack.c.l.b16 %v2555
  %v2780 = vunpack.c.l.b16 %v2556
  %v2781 = vunpack.c.l.b16 %v2557
  %v2782 = vunpack.c.l.b16 %v2558
  %v2783 = vunpack.c.l.b16 %v2559
  %v2784 = vunpack.c.l.b16 %v2560
  %v2785 = vunpack.c.l.b16 %v2561
  %v2786 = vunpack.c.l.b16 %v2562
  %v2787 = vunpack.c.l.b16 %v2563
  %v2788 = vunpack.c.l.b16 %v2564
  %v2789 = vunpack.c.l.b16 %v2565
  %v2790 = vunpack.c.l.b16 %v2566
  %v2791 = vunpack.c.l.b16 %v2567
  %v2792 = vunpack.c.l.b16 %v2568
  %v2793 = vunpack.c.l.b16 %v2569
  %v2794 = vunpack.c.l.b16 %v2570
  %v2795 = vunpack.c.l.b16 %v2571
  %v2796 = vunpack.c.l.b16 %v2572
  %v2797 = vunpack.c.l.b16 %v2573
  %v2798 = vunpack.c.l.b16 %v2574
  %v2799 = vunpack.c.l.b16 %v2575
  %v2800 = vunpack.c.l.b16 %v2576
  %v2801 = vunpack.c.l.b16 %v2577
  %v2802 = vunpack.c.l.b16 %v2578
  %v2803 = vunpack.c.l.b16 %v2579
  %v2804 = vunpack.c.l.b16 %v2580
  %v2805 = vunpack.c.l.b16 %v2581
  %v2806 = vunpack.c.l.b16 %v2582
  %v2807 = vunpack.c.l.b16 %v2583
  %v2808 = vunpack.c.l.b16 %v2584
  %v2809 = vunpack.c.l.b16 %v2585
  %v2810 = vunpack.c.l.b16 %v2586
  %v2811 = vunpack.c.l.b16 %v2587
  %v2812 = vunpack.c.l.b16 %v2588
  %v2813 = vunpack.c.l.b16 %v2589
  %v2814 = vunpack.c.l.b16 %v2590
  %v2815 = vunpack.c.l.b16 %v2591
  %v2816 = vunpack.c.l.b16 %v2592
  %v2817 = vunpack.c.l.b16 %v2593
  %v2818 = vunpack.c.l.b16 %v2594
  %v2819 = vunpack.c.l.b16 %v2595
  %v2820 = vunpack.c.l.b16 %v2596
  %v2821 = vunpack.c.l.b16 %v2597
  %v2822 = vunpack.c.l.b16 %v2598
  %v2823 = vunpack.c.l.b16 %v2599
  %v2824 = vunpack.c.l.b16 %v2600
  %v2825 = vunpack.c.l.b16 %v2601
  %v2826 = vunpack.c.l.b16 %v2602
  %v2827 = vunpack.c.l.b16 %v2603
  %v2828 = vunpack.c.l.b16 %v2604
  %v2829 = vunpack.c.l.b16 %v2605
  %v2830 = vunpack.c.l.b16 %v2606
  %v2831 = vunpack.c.l.b16 %v2607
  %v2832 = vunpack.c.l.b16 %v2608
  %v2833 = vunpack.c.l.b16 %v2609
  %v2834 = vunpack.c.l.b16 %v2610
  %v2835 = vunpack.c.l.b16 %v2611
  %v2836 = vunpack.c.l.b16 %v2612
  %v2837 = vunpack.c.l.b16 %v2613
  %v2838 = vunpack.c.l.b16 %v2614
  %v2839 = vunpack.c.l.b16 %v2615
  %v2840 = vunpack.c.l.b16 %v2616
  %v2841 = vunpack.c.l.b16 %v2617
  %v2842 = vunpack.c.l.b16 %v2618
  %v2843 = vunpack.c.l.b16 %v2619
  %v2844 = vunpack.c.l.b16 %v2620
  %v2845 = vunpack.c.l.b16 %v2621
  %v2846 = vunpack.c.l.b16 %v2622
  %v2847 = vunpack.c.l.b16 %v2623
  %v2848 = vunpack.c.l.b16 %v2624
  %v2849 = vunpack.c.l.b16 %v2625
  %v2850 = vunpack.c.l.b16 %v2626
  %v2851 = vunpack.c.l.b16 %v2627
  %v2852 = vunpack.c.l.b16 %v2628
  %v2853 = vunpack.c.l.b16 %v2629
  %v2854 = vunpack.c.l.b16 %v2630
  %v2855 = vunpack.c.l.b16 %v2631
  %v2856 = vunpack.c.l.b16 %v2632
  %v2857 = vpack.c.b16 %v2746, %v2745
  %v2858 = vpack.c.b16 %v2748, %v2747
  %v2859 = vpack.c.b16 %v2750, %v2749
  %v2860 = vpack.c.b16 %v2752, %v2751
  %v2861 = vpack.c.b16 %v2754, %v2753
  %v2862 = vpack.c.b16 %v2756, %v2755
  %v2863 = vpack.c.b16 %v2758, %v2757
  %v2864 = vpack.c.b16 %v2760, %v2759
  %v2865 = vpack.c.b16 %v2762, %v2761
  %v2866 = vpack.c.b16 %v2764, %v2763
  %v2867 = vpack.c.b16 %v2766, %v2765
  %v2868 = vpack.c.b16 %v2768, %v2767
  %v2869 = vpack.c.b16 %v2770, %v2769
  %v2870 = vpack.c.b16 %v2772, %v2771
  %v2871 = vpack.c.b16 %v2774, %v2773
  %v2872 = vpack.c.b16 %v2776, %v2775
  %v2873 = vpack.c.b16 %v2778, %v2777
  %v2874 = vpack.c.b16 %v2780, %v2779
  %v2875 = vpack.c.b16 %v2782, %v2781
  %v2876 = vpack.c.b16 %v2784, %v2783
  %v2877 = vpack.c.b16 %v2786, %v2785
  %v2878 = vpack.c.b16 %v2788, %v2787
  %v2879 = vpack.c.b16 %v2790, %v2789
  %v2880 = vpack.c.b16 %v2792, %v2791
  %v2881 = vpack.c.b16 %v2794, %v2793
  %v2882 = vpack.c.b16 %v2796, %v2795
  %v2883 = vpack.c.b16 %v2798, %v2797
  %v2884 = vpack.c.b16 %v2800, %v2799
  %v2885 = vpack.c.b16 %v2802, %v2801
  %v2886 = vpack.c.b16 %v2804, %v2803
  %v2887 = vpack.c.b16 %v2806, %v2805
  %v2888 = vpack.c.b16 %v2808, %v2807
  %v2889 = vpack.c.b16 %v2810, %v2809
  %v2890 = vpack.c.b16 %v2812, %v2811
  %v2891 = vpack.c.b16 %v2814, %v2813
  %v2892 = vpack.c.b16 %v2816, %v2815
  %v2893 = vpack.c.b16 %v2818, %v2817
  %v2894 = vpack.c.b16 %v2820, %v2819
  %v2895 = vpack.c.b16 %v2822, %v2821
  %v2896 = vpack.c.b16 %v2824, %v2823
  %v2897 = vpack.c.b16 %v2826, %v2825
  %v2898 = vpack.c.b16 %v2828, %v2827
  %v2899 = vpack.c.b16 %v2830, %v2829
  %v2900 = vpack.c.b16 %v2832, %v2831
  %v2901 = vpack.c.b16 %v2834, %v2833
  %v2902 = vpack.c.b16 %v2836, %v2835
  %v2903 = vpack.c.b16 %v2838, %v2837
  %v2904 = vpack.c.b16 %v2840, %v2839
  %v2905 = vpack.c.b16 %v2842, %v2841
  %v2906 = vpack.c.b16 %v2844, %v2843
  %v2907 = vpack.c.b16 %v2846, %v2845
  %v2908 = vpack.c.b16 %v2848, %v2847
  %v2909 = vpack.c.b16 %v2850, %v2849
  %v2910 = vpack.c.b16 %v2852, %v2851
  %v2911 = vpack.c.b16 %v2854, %v2853
  %v2912 = vpack.c.b16 %v2856, %v2855
  %2969 = vmatprep.subr.bf16.mxu0 0
  %2970 = vmatpush1.bf16.msra.mxu0 %v2857
  %2971 = vmatprep.subr.bf16.mxu0 0
  %2972 = vmatpush1.bf16.msra.mxu0 %v2858
  %2973 = vmatprep.subr.bf16.mxu0 0
  %2974 = vmatpush1.bf16.msra.mxu0 %v2859
  %2975 = vmatprep.subr.bf16.mxu0 0
  %2976 = vmatpush1.bf16.msra.mxu0 %v2860
  %2977 = vmatprep.subr.bf16.mxu0 0
  %2978 = vmatpush1.bf16.msra.mxu0 %v2861
  %2979 = vmatprep.subr.bf16.mxu0 0
  %2980 = vmatpush1.bf16.msra.mxu0 %v2862
  %2981 = vmatprep.subr.bf16.mxu0 0
  %2982 = vmatpush1.bf16.msra.mxu0 %v2863
  %2983 = vmatprep.subr.bf16.mxu0 0
  %2984 = vmatpush1.bf16.msra.mxu0 %v2864
  %2985 = vmatprep.subr.bf16.mxu0 0
  %2986 = vmatpush1.bf16.msra.mxu0 %v2865
  %2987 = vmatprep.subr.bf16.mxu0 0
  %2988 = vmatpush1.bf16.msra.mxu0 %v2866
  %2989 = vmatprep.subr.bf16.mxu0 0
  %2990 = vmatpush1.bf16.msra.mxu0 %v2867
  %2991 = vmatprep.subr.bf16.mxu0 0
  %2992 = vmatpush1.bf16.msra.mxu0 %v2868
  %2993 = vmatprep.subr.bf16.mxu0 0
  %2994 = vmatpush1.bf16.msra.mxu0 %v2869
  %2995 = vmatprep.subr.bf16.mxu0 0
  %2996 = vmatpush1.bf16.msra.mxu0 %v2870
  %2997 = vmatprep.subr.bf16.mxu0 0
  %2998 = vmatpush1.bf16.msra.mxu0 %v2871
  %2999 = vmatprep.subr.bf16.mxu0 0
  %3000 = vmatpush1.bf16.msra.mxu0 %v2872
  %3001 = vmatprep.mubr.bf16.mxu0 %v2508
  %3002 = vmatmul.mubr.bf16.gmra.mrb[0].mxu0 %v2507
  %v3003 = vpop.f32.mrb[0].mxu0
  %v3004 = vadd.f32 0.0, %v3003
  %v3005 = vpop.f32.mrb[0].mxu0
  %v3006 = vpop.f32.mrb[0].mxu0
  %v3007 = vadd.f32 0.0, %v3006
  %v3008 = vpop.f32.mrb[0].mxu0
  %3009 = vmatprep.mubr.bf16.mxu0 %v2515
  %3010 = vmatmul.mubr.bf16.gmra.mrb[0].mxu0 %v2514
  %v3011 = vpop.f32.mrb[0].mxu0
  %v3012 = vadd.f32 0.0, %v3011
  %v3013 = vpop.f32.mrb[0].mxu0
  %v3014 = vpop.f32.mrb[0].mxu0
  %v3015 = vpop.f32.mrb[0].mxu0
  %3016 = vdwg.mxu0
  %3017 = vmatprep.subr.bf16.mxu0 0
  %3018 = vmatpush1.bf16.msra.mxu0 %v2873
  %3019 = vmatprep.subr.bf16.mxu0 0
  %3020 = vmatpush1.bf16.msra.mxu0 %v2874
  %3021 = vmatprep.subr.bf16.mxu0 0
  %3022 = vmatpush1.bf16.msra.mxu0 %v2875
  %3023 = vmatprep.subr.bf16.mxu0 0
  %3024 = vmatpush1.bf16.msra.mxu0 %v2876
  %3025 = vmatprep.subr.bf16.mxu0 0
  %3026 = vmatpush1.bf16.msra.mxu0 %v2877
  %3027 = vmatprep.subr.bf16.mxu0 0
  %3028 = vmatpush1.bf16.msra.mxu0 %v2878
  %3029 = vmatprep.subr.bf16.mxu0 0
  %3030 = vmatpush1.bf16.msra.mxu0 %v2879
  %3031 = vmatprep.subr.bf16.mxu0 0
  %3032 = vmatpush1.bf16.msra.mxu0 %v2880
  %3033 = vmatprep.subr.bf16.mxu0 0
  %3034 = vmatpush1.bf16.msra.mxu0 %v2881
  %3035 = vmatprep.subr.bf16.mxu0 0
  %3036 = vmatpush1.bf16.msra.mxu0 %v2882
  %3037 = vmatprep.subr.bf16.mxu0 0
  %3038 = vmatpush1.bf16.msra.mxu0 %v2883
  %3039 = vmatprep.subr.bf16.mxu0 0
  %3040 = vmatpush1.bf16.msra.mxu0 %v2884
  %3041 = vmatprep.subr.bf16.mxu0 0
  %3042 = vmatpush1.bf16.msra.mxu0 %v2885
  %3043 = vmatprep.subr.bf16.mxu0 0
  %3044 = vmatpush1.bf16.msra.mxu0 %v2886
  %3045 = vmatprep.subr.bf16.mxu0 0
  %3046 = vmatpush1.bf16.msra.mxu0 %v2887
  %3047 = vmatprep.subr.bf16.mxu0 0
  %3048 = vmatpush1.bf16.msra.mxu0 %v2888
  %3049 = vmatprep.mubr.bf16.mxu0 %v2510
  %3050 = vmatmul.mubr.bf16.gmra.mrb[0].mxu0 %v2509
  %v3051 = vpop.f32.mrb[0].mxu0
  %v3052 = vadd.f32 %v3004, %v3051
  %v3053 = vpop.f32.mrb[0].mxu0
  %v3054 = vpop.f32.mrb[0].mxu0
  %v3055 = vadd.f32 %v3007, %v3054
  %v3056 = vpop.f32.mrb[0].mxu0
  %3057 = vmatprep.mubr.bf16.mxu0 %v2517
  %3058 = vmatmul.mubr.bf16.gmra.mrb[0].mxu0 %v2516
  %v3059 = vpop.f32.mrb[0].mxu0
  %v3060 = vadd.f32 %v3012, %v3059
  %v3061 = vpop.f32.mrb[0].mxu0
  %v3062 = vpop.f32.mrb[0].mxu0
  %v3063 = vpop.f32.mrb[0].mxu0
  %3064 = vdwg.mxu0
  %3065 = vmatprep.subr.bf16.mxu0 0
  %3066 = vmatpush1.bf16.msra.mxu0 %v2889
  %3067 = vmatprep.subr.bf16.mxu0 0
  %3068 = vmatpush1.bf16.msra.mxu0 %v2890
  %3069 = vmatprep.subr.bf16.mxu0 0
  %3070 = vmatpush1.bf16.msra.mxu0 %v2891
  %3071 = vmatprep.subr.bf16.mxu0 0
  %3072 = vmatpush1.bf16.msra.mxu0 %v2892
  %3073 = vmatprep.subr.bf16.mxu0 0
  %3074 = vmatpush1.bf16.msra.mxu0 %v2893
  %3075 = vmatprep.subr.bf16.mxu0 0
  %3076 = vmatpush1.bf16.msra.mxu0 %v2894
  %3077 = vmatprep.subr.bf16.mxu0 0
  %3078 = vmatpush1.bf16.msra.mxu0 %v2895
  %3079 = vmatprep.subr.bf16.mxu0 0
  %3080 = vmatpush1.bf16.msra.mxu0 %v2896
  %3081 = vmatprep.subr.bf16.mxu0 0
  %3082 = vmatpush1.bf16.msra.mxu0 %v2897
  %3083 = vmatprep.subr.bf16.mxu0 0
  %3084 = vmatpush1.bf16.msra.mxu0 %v2898
  %3085 = vmatprep.subr.bf16.mxu0 0
  %3086 = vmatpush1.bf16.msra.mxu0 %v2899
  %3087 = vmatprep.subr.bf16.mxu0 0
  %3088 = vmatpush1.bf16.msra.mxu0 %v2900
  %3089 = vmatprep.subr.bf16.mxu0 0
  %3090 = vmatpush1.bf16.msra.mxu0 %v2901
  %3091 = vmatprep.subr.bf16.mxu0 0
  %3092 = vmatpush1.bf16.msra.mxu0 %v2902
  %3093 = vmatprep.subr.bf16.mxu0 0
  %3094 = vmatpush1.bf16.msra.mxu0 %v2903
  %3095 = vmatprep.subr.bf16.mxu0 0
  %3096 = vmatpush1.bf16.msra.mxu0 %v2904
  %3097 = vmatprep.mubr.bf16.mxu0 %v2512
  %3098 = vmatmul.mubr.bf16.gmra.mrb[0].mxu0 %v2511
  %v3099 = vpop.f32.mrb[0].mxu0
  %v3100 = vadd.f32 %v3052, %v3099
  %v3101 = vpop.f32.mrb[0].mxu0
  %v3102 = vpop.f32.mrb[0].mxu0
  %v3103 = vadd.f32 %v3055, %v3102
  %v3104 = vpop.f32.mrb[0].mxu0
  %3105 = vmatprep.mubr.bf16.mxu0 %v2519
  %3106 = vmatmul.mubr.bf16.gmra.mrb[0].mxu0 %v2518
  %v3107 = vpop.f32.mrb[0].mxu0
  %v3108 = vadd.f32 %v3060, %v3107
  %v3109 = vpop.f32.mrb[0].mxu0
  %v3110 = vpop.f32.mrb[0].mxu0
  %v3111 = vpop.f32.mrb[0].mxu0
  %3112 = vdwg.mxu0
  %3113 = vmatprep.subr.bf16.mxu0 0
  %3114 = vmatpush1.bf16.msra.mxu0 %v2905
  %3115 = vmatprep.subr.bf16.mxu0 0
  %3116 = vmatpush1.bf16.msra.mxu0 %v2906
  %3117 = vmatprep.subr.bf16.mxu0 0
  %3118 = vmatpush1.bf16.msra.mxu0 %v2907
  %3119 = vmatprep.subr.bf16.mxu0 0
  %3120 = vmatpush1.bf16.msra.mxu0 %v2908
  %3121 = vmatprep.subr.bf16.mxu0 0
  %3122 = vmatpush1.bf16.msra.mxu0 %v2909
  %3123 = vmatprep.subr.bf16.mxu0 0
  %3124 = vmatpush1.bf16.msra.mxu0 %v2910
  %3125 = vmatprep.subr.bf16.mxu0 0
  %3126 = vmatpush1.bf16.msra.mxu0 %v2911
  %3127 = vmatprep.subr.bf16.mxu0 0
  %3128 = vmatpush1.bf16.msra.mxu0 %v2912
  %3129 = vmatprep.subr.bf16.mxu0 0
  %3130 = vmatpush1.bf16.msra.mxu0 0
  %3131 = vmatprep.subr.bf16.mxu0 0
  %3132 = vmatpush1.bf16.msra.mxu0 0
  %3133 = vmatprep.subr.bf16.mxu0 0
  %3134 = vmatpush1.bf16.msra.mxu0 0
  %3135 = vmatprep.subr.bf16.mxu0 0
  %3136 = vmatpush1.bf16.msra.mxu0 0
  %3137 = vmatprep.subr.bf16.mxu0 0
  %3138 = vmatpush1.bf16.msra.mxu0 0
  %3139 = vmatprep.subr.bf16.mxu0 0
  %3140 = vmatpush1.bf16.msra.mxu0 0
  %3141 = vmatprep.subr.bf16.mxu0 0
  %3142 = vmatpush1.bf16.msra.mxu0 0
  %3143 = vmatprep.subr.bf16.mxu0 0
  %3144 = vmatpush1.bf16.msra.mxu0 0
  %3145 = vmatprep.mubr.bf16.mxu0 0
  %3146 = vmatmul.mubr.bf16.gmra.mrb[0].mxu0 %v2513
  %v3147 = vpop.f32.mrb[0].mxu0
  %v3148 = vadd.f32 %v3100, %v3147
  %v3149 = vpop.f32.mrb[0].mxu0
  %v3150 = vpop.f32.mrb[0].mxu0
  %v3151 = vadd.f32 %v3103, %v3150
  %v3152 = vpop.f32.mrb[0].mxu0
  %3153 = vmatprep.mubr.bf16.mxu0 0
  %3154 = vmatmul.mubr.bf16.gmra.mrb[0].mxu0 %v2520
  %v3155 = vpop.f32.mrb[0].mxu0
  %v3156 = vadd.f32 %v3108, %v3155
  %v3157 = vpop.f32.mrb[0].mxu0
  %v3158 = vpop.f32.mrb[0].mxu0
  %v3159 = vpop.f32.mrb[0].mxu0
  %3160 = vdwg.mxu0
  %3161 = vst [vmem:[%s7] sm:$0xff] %v3148
  %s3162 = scalar_lea.vmem %s7, 8
  %3163 = vst [vmem:[%s3162] sm:$0xff] %v3151
  %s3164 = scalar_lea.vmem %s7, 16
  %3165 = vst [vmem:[%s3164] sm:$0xff] %v3156
  // Predicated region
  $region26: #{mano_forward.1} parent=0 // pred_check
    _
  $region27: #{mano_forward.1} parent=0 // pred_check_branch
    %3167 = sbr.rel (0) target = $region29
  $region28: #{mano_forward.1} parent=0 // pred_region
    _
  $region29: #{mano_forward.1} parent=0 // pred_fallthru
    _
  // Predicated region
  $region30: #{mano_forward.1} parent=0 // pred_check
    _
  $region31: #{mano_forward.1} parent=0 // pred_check_branch
    %3169 = sbr.rel (0) target = $region33
  $region32: #{mano_forward.1} parent=0 // pred_region
    _
  $region33: #{mano_forward.1} parent=0 // pred_fallthru
    _
  // Predicated region
  $region34: #{mano_forward.1} parent=0 // pred_check
    _
  $region35: #{mano_forward.1} parent=0 // pred_check_branch
    %3171 = sbr.rel (0) target = $region37
  $region36: #{mano_forward.1} parent=0 // pred_region
    _
  $region37: #{mano_forward.1} parent=0 // pred_fallthru
    _
  // Predicated region
  $region38: #{mano_forward.1} parent=0 // pred_check
    _
  $region39: #{mano_forward.1} parent=0 // pred_check_branch
    %3173 = sbr.rel (0) target = $region41
  $region40: #{mano_forward.1} parent=0 // pred_region
    _
  $region41: #{mano_forward.1} parent=0 // pred_fallthru
    _

</llo_original>
